<compile_context>
chip_gen: v6e
topology: v6e:2x2x1
jax: 0.10.0
libtpu: 0.0.40
codegen_flags: <defaults>
</compile_context>

<pallas_src>
import functools

import jax
import jax.numpy as jnp
from jax.experimental import pallas as pl
from jax.experimental.pallas import tpu as pltpu


def fused_basic_layer_kernel(x_ref, w_ref, o_ref, xpad_ref, patches_ref, *, eps):
    # x_ref:       (1, H, W, Cin)   current image (NHWC block)
    # w_ref:       (Cout, 9*Cin)    flattened conv weight, K ordered as (dy, dx, cin)
    # o_ref:       (N, Cout, H*W)   whole-batch output, resident in VMEM across the grid
    # xpad_ref:    (H+2, W+2, Cin)  VMEM scratch: zero halo + image interior
    # patches_ref: (H*W, 9*Cin)     VMEM scratch: im2col patch matrix
    _, H, W, Cin = x_ref.shape
    N, Cout, HW = o_ref.shape
    n = pl.program_id(0)

    # ---- pad=1 halo built in VMEM (no wrapper jnp.pad / extra HBM pass) ----
    xpad_ref[...] = jnp.zeros_like(xpad_ref)
    xpad_ref[1:H + 1, 1:W + 1, :] = x_ref[0]

    # ---- im2col: 9 shifted taps packed into the (H*W, 9*Cin) patch matrix ----
    for t, (dy, dx) in enumerate((dy, dx) for dy in range(3) for dx in range(3)):
        patches_ref[:, t * Cin:(t + 1) * Cin] = (
            xpad_ref[dy:dy + H, dx:dx + W, :].reshape(HW, Cin)
        )

    # ---- single MXU contraction: (Cout, 9Cin) . (HW, 9Cin)^T -> (Cout, HW) ----
    conv = jax.lax.dot_general(
        w_ref[...],
        patches_ref[...],
        dimension_numbers=(((1,), (1,)), ((), ())),
        preferred_element_type=jnp.float32,
    )
    o_ref[n] = conv  # store this image's conv result into the resident output block

    # ---- last image: training-mode BatchNorm (biased var, eps) + ReLU, in place ----
    @pl.when(n == pl.num_programs(0) - 1)
    def _():
        inv_cnt = 1.0 / float(N * HW)
        total = jnp.zeros((Cout, 1), jnp.float32)
        for i in range(N):  # N is small and static -> trace-time unrolled, 2-D lane ops
            total = total + jnp.sum(o_ref[i], axis=1, keepdims=True)
        mean = total * inv_cnt
        sq = jnp.zeros((Cout, 1), jnp.float32)
        for i in range(N):
            d = o_ref[i] - mean
            sq = sq + jnp.sum(d * d, axis=1, keepdims=True)
        inv_std = jax.lax.rsqrt(sq * inv_cnt + eps)
        for i in range(N):
            o_ref[i] = jnp.maximum((o_ref[i] - mean) * inv_std, 0.0)


@functools.partial(jax.jit, static_argnames=("eps",))
def basic_layer_forward(x_nchw, w_oihw, eps=1e-5):
    """BasicLayer forward. x_nchw: (N, Cin, H, W). w_oihw: (Cout, Cin, 3, 3)."""
    N, Cin, H, W = x_nchw.shape
    Cout = w_oihw.shape[0]

    # NHWC so the channel dim feeds the contraction (K) axis of the im2col matmul;
    # weight pre-flattened to (Cout, 9*Cin) with K ordered (dy, dx, cin) to match
    # the in-kernel patch layout. Both are tiny one-off relayouts.
    x_nhwc = jnp.transpose(x_nchw, (0, 2, 3, 1)).astype(jnp.float32)
    w_flat = (
        jnp.transpose(w_oihw, (0, 2, 3, 1)).astype(jnp.float32).reshape(Cout, 9 * Cin)
    )

    out_flat = pl.pallas_call(
        functools.partial(fused_basic_layer_kernel, eps=eps),
        out_shape=jax.ShapeDtypeStruct((N, Cout, H * W), jnp.float32),
        grid_spec=pltpu.PrefetchScalarGridSpec(
            num_scalar_prefetch=0,
            grid=(N,),
            in_specs=[
                pl.BlockSpec((1, H, W, Cin), lambda n: (n, 0, 0, 0)),
                pl.BlockSpec((Cout, 9 * Cin), lambda n: (0, 0)),
            ],
            # Constant block index -> the whole (N, Cout, H*W) output stays resident in
            # VMEM across grid steps; batch stats + normalize are applied on the last
            # step, then a single HBM writeback happens at grid end.
            out_specs=pl.BlockSpec((N, Cout, H * W), lambda n: (0, 0, 0)),
            scratch_shapes=[
                pltpu.VMEM((H + 2, W + 2, Cin), jnp.float32),   # padded image halo
                pltpu.VMEM((H * W, 9 * Cin), jnp.float32),      # im2col patch matrix
            ],
        ),
        compiler_params=pltpu.CompilerParams(
            # Resident output + batch-stat finalize carry state across grid steps.
            # TODO(synk): on v7x a 2-way split of H*W across TensorCores with a shared
            # stats reduction could use both cores; not worth it at this problem size.
            dimension_semantics=("arbitrary",),
        ),
    )(x_nhwc, w_flat)

    # (N, Cout, H*W) -> (N, Cout, H, W): free reshape, no transpose.
    return out_flat.reshape(N, Cout, H, W)


def _reference_forward(x_nchw, w_oihw, eps=1e-5):
    """Pure-JAX reference matching PyTorch: Conv2d -> BatchNorm2d(train, affine=False) -> ReLU."""
    y = jax.lax.conv_general_dilated(
        x_nchw.astype(jnp.float32),
        w_oihw.astype(jnp.float32),
        window_strides=(1, 1),
        padding=((1, 1), (1, 1)),
        dimension_numbers=("NCHW", "OIHW", "NCHW"),
    )
    mean = jnp.mean(y, axis=(0, 2, 3), keepdims=True)
    var = jnp.mean(jnp.square(y - mean), axis=(0, 2, 3), keepdims=True)
    return jnp.maximum((y - mean) * jax.lax.rsqrt(var + eps), 0.0)


if __name__ == "__main__":
    # Small shapes: batch=2, in_channels=4, out_channels=8, spatial=16x16
    N, Cin, Cout, H, W = 2, 4, 8, 16, 16

    key = jax.random.PRNGKey(0)
    kx, kw = jax.random.split(key)
    x = jax.random.normal(kx, (N, Cin, H, W), dtype=jnp.float32)
    # Deterministic Kaiming-like init for Conv2d weight (Cout, Cin, 3, 3), bias=False.
    fan_in = Cin * 3 * 3
    w = jax.random.normal(kw, (Cout, Cin, 3, 3), dtype=jnp.float32) * (2.0 / fan_in) ** 0.5

    out = jax.block_until_ready(basic_layer_forward(x, w))
    ref = jax.block_until_ready(_reference_forward(x, w))

    assert out.shape == (N, Cout, H, W)
    assert jnp.allclose(out, ref, atol=1e-4, rtol=1e-4), "mismatch vs JAX reference"

    print("KERNEL_OK")
</pallas_src>

<mosaic_0001>
module attributes {stable_mosaic.version = 11 : i64} {
  func.func @fused_basic_layer_kernel(%arg0: i32, %arg1: memref<1x16x16x4xf32, #tpu.memory_space<vmem>>, %arg2: memref<8x36xf32, #tpu.memory_space<vmem>>, %arg3: memref<2x8x256xf32, #tpu.memory_space<vmem>>, %arg4: memref<18x18x4xf32, #tpu.memory_space<vmem>>, %arg5: memref<256x36xf32, #tpu.memory_space<vmem>>) attributes {dimension_semantics = [#tpu.dimension_semantics<arbitrary>], iteration_bounds = array<i64: 2>, scalar_prefetch = 0 : i64, scratch_operands = 2 : i64, tpu.core_type = #tpu.core_type<tc>, window_params = [{transform_indices = @transform_0, window_bounds = array<i64: 1, 16, 16, 4>}, {pipeline_mode = #tpu.pipeline_mode<synchronous>, transform_indices = @transform_1, window_bounds = array<i64: 8, 36>}, {pipeline_mode = #tpu.pipeline_mode<synchronous>, transform_indices = @transform_2, window_bounds = array<i64: 2, 8, 256>}]} {
    %cst = arith.constant 0.000000e+00 : f32
    %0 = vector.broadcast %cst : f32 to vector<18x18x4xf32>
    %c0 = arith.constant 0 : index
    %c0_0 = arith.constant 0 : index
    %c0_1 = arith.constant 0 : index
    %1 = vector.load %arg4[%c0, %c0_0, %c0_1] : memref<18x18x4xf32, #tpu.memory_space<vmem>>, vector<18x18x4xf32>
    tpu.vector_store %arg4[%c0, %c0_0, %c0_1], %0 {strides = array<i32>} : memref<18x18x4xf32, #tpu.memory_space<vmem>>, vector<18x18x4xf32>,
    %c0_2 = arith.constant 0 : index
    %c0_3 = arith.constant 0 : index
    %c0_4 = arith.constant 0 : index
    %c0_5 = arith.constant 0 : index
    %2 = vector.load %arg1[%c0_2, %c0_3, %c0_4, %c0_5] : memref<1x16x16x4xf32, #tpu.memory_space<vmem>>, vector<1x16x16x4xf32>
    %3 = vector.shape_cast %2 : vector<1x16x16x4xf32> to vector<16x16x4xf32>
    %c1 = arith.constant 1 : index
    %c1_6 = arith.constant 1 : index
    %c0_7 = arith.constant 0 : index
    %4 = vector.load %arg4[%c1, %c1_6, %c0_7] : memref<18x18x4xf32, #tpu.memory_space<vmem>>, vector<16x16x4xf32>
    tpu.vector_store %arg4[%c1, %c1_6, %c0_7], %3 {strides = array<i32>} : memref<18x18x4xf32, #tpu.memory_space<vmem>>, vector<16x16x4xf32>,
    %c0_8 = arith.constant 0 : index
    %c0_9 = arith.constant 0 : index
    %c0_10 = arith.constant 0 : index
    %5 = vector.load %arg4[%c0_8, %c0_9, %c0_10] : memref<18x18x4xf32, #tpu.memory_space<vmem>>, vector<16x16x4xf32>
    %6 = vector.shape_cast %5 : vector<16x16x4xf32> to vector<256x4xf32>
    %c0_11 = arith.constant 0 : index
    %c0_12 = arith.constant 0 : index
    %7 = vector.load %arg5[%c0_11, %c0_12] : memref<256x36xf32, #tpu.memory_space<vmem>>, vector<256x4xf32>
    tpu.vector_store %arg5[%c0_11, %c0_12], %6 {strides = array<i32>} : memref<256x36xf32, #tpu.memory_space<vmem>>, vector<256x4xf32>,
    %c0_13 = arith.constant 0 : index
    %c1_14 = arith.constant 1 : index
    %c0_15 = arith.constant 0 : index
    %8 = vector.load %arg4[%c0_13, %c1_14, %c0_15] : memref<18x18x4xf32, #tpu.memory_space<vmem>>, vector<16x16x4xf32>
    %9 = vector.shape_cast %8 : vector<16x16x4xf32> to vector<256x4xf32>
    %c0_16 = arith.constant 0 : index
    %c4 = arith.constant 4 : index
    %10 = vector.load %arg5[%c0_16, %c4] : memref<256x36xf32, #tpu.memory_space<vmem>>, vector<256x4xf32>
    tpu.vector_store %arg5[%c0_16, %c4], %9 {strides = array<i32>} : memref<256x36xf32, #tpu.memory_space<vmem>>, vector<256x4xf32>,
    %c0_17 = arith.constant 0 : index
    %c2 = arith.constant 2 : index
    %c0_18 = arith.constant 0 : index
    %11 = vector.load %arg4[%c0_17, %c2, %c0_18] : memref<18x18x4xf32, #tpu.memory_space<vmem>>, vector<16x16x4xf32>
    %12 = vector.shape_cast %11 : vector<16x16x4xf32> to vector<256x4xf32>
    %c0_19 = arith.constant 0 : index
    %c8 = arith.constant 8 : index
    %13 = vector.load %arg5[%c0_19, %c8] : memref<256x36xf32, #tpu.memory_space<vmem>>, vector<256x4xf32>
    tpu.vector_store %arg5[%c0_19, %c8], %12 {strides = array<i32>} : memref<256x36xf32, #tpu.memory_space<vmem>>, vector<256x4xf32>,
    %c1_20 = arith.constant 1 : index
    %c0_21 = arith.constant 0 : index
    %c0_22 = arith.constant 0 : index
    %14 = vector.load %arg4[%c1_20, %c0_21, %c0_22] : memref<18x18x4xf32, #tpu.memory_space<vmem>>, vector<16x16x4xf32>
    %15 = vector.shape_cast %14 : vector<16x16x4xf32> to vector<256x4xf32>
    %c0_23 = arith.constant 0 : index
    %c12 = arith.constant 12 : index
    %16 = vector.load %arg5[%c0_23, %c12] : memref<256x36xf32, #tpu.memory_space<vmem>>, vector<256x4xf32>
    tpu.vector_store %arg5[%c0_23, %c12], %15 {strides = array<i32>} : memref<256x36xf32, #tpu.memory_space<vmem>>, vector<256x4xf32>,
    %c1_24 = arith.constant 1 : index
    %c1_25 = arith.constant 1 : index
    %c0_26 = arith.constant 0 : index
    %17 = vector.load %arg4[%c1_24, %c1_25, %c0_26] : memref<18x18x4xf32, #tpu.memory_space<vmem>>, vector<16x16x4xf32>
    %18 = vector.shape_cast %17 : vector<16x16x4xf32> to vector<256x4xf32>
    %c0_27 = arith.constant 0 : index
    %c16 = arith.constant 16 : index
    %19 = vector.load %arg5[%c0_27, %c16] : memref<256x36xf32, #tpu.memory_space<vmem>>, vector<256x4xf32>
    tpu.vector_store %arg5[%c0_27, %c16], %18 {strides = array<i32>} : memref<256x36xf32, #tpu.memory_space<vmem>>, vector<256x4xf32>,
    %c1_28 = arith.constant 1 : index
    %c2_29 = arith.constant 2 : index
    %c0_30 = arith.constant 0 : index
    %20 = vector.load %arg4[%c1_28, %c2_29, %c0_30] : memref<18x18x4xf32, #tpu.memory_space<vmem>>, vector<16x16x4xf32>
    %21 = vector.shape_cast %20 : vector<16x16x4xf32> to vector<256x4xf32>
    %c0_31 = arith.constant 0 : index
    %c20 = arith.constant 20 : index
    %22 = vector.load %arg5[%c0_31, %c20] : memref<256x36xf32, #tpu.memory_space<vmem>>, vector<256x4xf32>
    tpu.vector_store %arg5[%c0_31, %c20], %21 {strides = array<i32>} : memref<256x36xf32, #tpu.memory_space<vmem>>, vector<256x4xf32>,
    %c2_32 = arith.constant 2 : index
    %c0_33 = arith.constant 0 : index
    %c0_34 = arith.constant 0 : index
    %23 = vector.load %arg4[%c2_32, %c0_33, %c0_34] : memref<18x18x4xf32, #tpu.memory_space<vmem>>, vector<16x16x4xf32>
    %24 = vector.shape_cast %23 : vector<16x16x4xf32> to vector<256x4xf32>
    %c0_35 = arith.constant 0 : index
    %c24 = arith.constant 24 : index
    %25 = vector.load %arg5[%c0_35, %c24] : memref<256x36xf32, #tpu.memory_space<vmem>>, vector<256x4xf32>
    tpu.vector_store %arg5[%c0_35, %c24], %24 {strides = array<i32>} : memref<256x36xf32, #tpu.memory_space<vmem>>, vector<256x4xf32>,
    %c2_36 = arith.constant 2 : index
    %c1_37 = arith.constant 1 : index
    %c0_38 = arith.constant 0 : index
    %26 = vector.load %arg4[%c2_36, %c1_37, %c0_38] : memref<18x18x4xf32, #tpu.memory_space<vmem>>, vector<16x16x4xf32>
    %27 = vector.shape_cast %26 : vector<16x16x4xf32> to vector<256x4xf32>
    %c0_39 = arith.constant 0 : index
    %c28 = arith.constant 28 : index
    %28 = vector.load %arg5[%c0_39, %c28] : memref<256x36xf32, #tpu.memory_space<vmem>>, vector<256x4xf32>
    tpu.vector_store %arg5[%c0_39, %c28], %27 {strides = array<i32>} : memref<256x36xf32, #tpu.memory_space<vmem>>, vector<256x4xf32>,
    %c2_40 = arith.constant 2 : index
    %c2_41 = arith.constant 2 : index
    %c0_42 = arith.constant 0 : index
    %29 = vector.load %arg4[%c2_40, %c2_41, %c0_42] : memref<18x18x4xf32, #tpu.memory_space<vmem>>, vector<16x16x4xf32>
    %30 = vector.shape_cast %29 : vector<16x16x4xf32> to vector<256x4xf32>
    %c0_43 = arith.constant 0 : index
    %c32 = arith.constant 32 : index
    %31 = vector.load %arg5[%c0_43, %c32] : memref<256x36xf32, #tpu.memory_space<vmem>>, vector<256x4xf32>
    tpu.vector_store %arg5[%c0_43, %c32], %30 {strides = array<i32>} : memref<256x36xf32, #tpu.memory_space<vmem>>, vector<256x4xf32>,
    %c0_44 = arith.constant 0 : index
    %c0_45 = arith.constant 0 : index
    %32 = vector.load %arg2[%c0_44, %c0_45] : memref<8x36xf32, #tpu.memory_space<vmem>>, vector<8x36xf32>
    %c0_46 = arith.constant 0 : index
    %c0_47 = arith.constant 0 : index
    %33 = vector.load %arg5[%c0_46, %c0_47] : memref<256x36xf32, #tpu.memory_space<vmem>>, vector<256x36xf32>
    %cst_48 = arith.constant dense<0.000000e+00> : vector<8x256xf32>
    %34 = tpu.matmul %32, %33, %cst_48 {dimension_numbers = #tpu.dot_dimension_numbers<[1], [1], [0], [0], [0, 0, 1, 0], [], []>} : vector<8x36xf32>, vector<256x36xf32>, vector<8x256xf32> -> vector<8x256xf32>
    %35 = arith.index_cast %arg0 : i32 to index
    %c0_49 = arith.constant 0 : index
    %c0_50 = arith.constant 0 : index
    %36 = vector.load %arg3[%35, %c0_49, %c0_50] : memref<2x8x256xf32, #tpu.memory_space<vmem>>, vector<1x8x256xf32>
    %37 = vector.shape_cast %36 : vector<1x8x256xf32> to vector<8x256xf32>
    %38 = vector.shape_cast %34 : vector<8x256xf32> to vector<1x8x256xf32>
    tpu.vector_store %arg3[%35, %c0_49, %c0_50], %38 {strides = array<i32>} : memref<2x8x256xf32, #tpu.memory_space<vmem>>, vector<1x8x256xf32>,
    %c1_i32 = arith.constant 1 : i32
    %39 = arith.cmpi eq, %arg0, %c1_i32 : i32
    %40 = arith.extui %39 : i1 to i32
    %c0_i32 = arith.constant 0 : i32
    %41 = arith.cmpi ne, %40, %c0_i32 : i32
    scf.if %41 {
      %cst_51 = arith.constant 0.000000e+00 : f32
      %42 = vector.broadcast %cst_51 : f32 to vector<8x1xf32>
      %c0_52 = arith.constant 0 : index
      %c0_53 = arith.constant 0 : index
      %c0_54 = arith.constant 0 : index
      %43 = vector.load %arg3[%c0_52, %c0_53, %c0_54] : memref<2x8x256xf32, #tpu.memory_space<vmem>>, vector<1x8x256xf32>
      %44 = vector.shape_cast %43 : vector<1x8x256xf32> to vector<8x256xf32>
      %cst_55 = arith.constant dense<0.000000e+00> : vector<8xf32>
      %45 = vector.multi_reduction <add>, %44, %cst_55 [1] : vector<8x256xf32> to vector<8xf32>
      %46 = vector.shape_cast %45 : vector<8xf32> to vector<8x1xf32>
      %47 = arith.addf %42, %46 : vector<8x1xf32>
      %c1_56 = arith.constant 1 : index
      %c0_57 = arith.constant 0 : index
      %c0_58 = arith.constant 0 : index
      %48 = vector.load %arg3[%c1_56, %c0_57, %c0_58] : memref<2x8x256xf32, #tpu.memory_space<vmem>>, vector<1x8x256xf32>
      %49 = vector.shape_cast %48 : vector<1x8x256xf32> to vector<8x256xf32>
      %cst_59 = arith.constant dense<0.000000e+00> : vector<8xf32>
      %50 = vector.multi_reduction <add>, %49, %cst_59 [1] : vector<8x256xf32> to vector<8xf32>
      %51 = vector.shape_cast %50 : vector<8xf32> to vector<8x1xf32>
      %52 = arith.addf %47, %51 : vector<8x1xf32>
      %cst_60 = arith.constant 0.001953125 : f32
      %53 = vector.broadcast %cst_60 : f32 to vector<8x1xf32>
      %54 = arith.mulf %52, %53 : vector<8x1xf32>
      %cst_61 = arith.constant 0.000000e+00 : f32
      %55 = vector.broadcast %cst_61 : f32 to vector<8x1xf32>
      %c0_62 = arith.constant 0 : index
      %c0_63 = arith.constant 0 : index
      %c0_64 = arith.constant 0 : index
      %56 = vector.load %arg3[%c0_62, %c0_63, %c0_64] : memref<2x8x256xf32, #tpu.memory_space<vmem>>, vector<1x8x256xf32>
      %57 = vector.shape_cast %56 : vector<1x8x256xf32> to vector<8x256xf32>
      %58 = vector.broadcast %54 : vector<8x1xf32> to vector<8x256xf32>
      %59 = arith.subf %57, %58 : vector<8x256xf32>
      %60 = arith.mulf %59, %59 : vector<8x256xf32>
      %cst_65 = arith.constant dense<0.000000e+00> : vector<8xf32>
      %61 = vector.multi_reduction <add>, %60, %cst_65 [1] : vector<8x256xf32> to vector<8xf32>
      %62 = vector.shape_cast %61 : vector<8xf32> to vector<8x1xf32>
      %63 = arith.addf %55, %62 : vector<8x1xf32>
      %c1_66 = arith.constant 1 : index
      %c0_67 = arith.constant 0 : index
      %c0_68 = arith.constant 0 : index
      %64 = vector.load %arg3[%c1_66, %c0_67, %c0_68] : memref<2x8x256xf32, #tpu.memory_space<vmem>>, vector<1x8x256xf32>
      %65 = vector.shape_cast %64 : vector<1x8x256xf32> to vector<8x256xf32>
      %66 = vector.broadcast %54 : vector<8x1xf32> to vector<8x256xf32>
      %67 = arith.subf %65, %66 : vector<8x256xf32>
      %68 = arith.mulf %67, %67 : vector<8x256xf32>
      %cst_69 = arith.constant dense<0.000000e+00> : vector<8xf32>
      %69 = vector.multi_reduction <add>, %68, %cst_69 [1] : vector<8x256xf32> to vector<8xf32>
      %70 = vector.shape_cast %69 : vector<8xf32> to vector<8x1xf32>
      %71 = arith.addf %63, %70 : vector<8x1xf32>
      %cst_70 = arith.constant 0.001953125 : f32
      %72 = vector.broadcast %cst_70 : f32 to vector<8x1xf32>
      %73 = arith.mulf %71, %72 : vector<8x1xf32>
      %cst_71 = arith.constant 9.99999974E-6 : f32
      %74 = vector.broadcast %cst_71 : f32 to vector<8x1xf32>
      %75 = arith.addf %73, %74 : vector<8x1xf32>
      %76 = math.rsqrt %75 : vector<8x1xf32>
      %c0_72 = arith.constant 0 : index
      %c0_73 = arith.constant 0 : index
      %c0_74 = arith.constant 0 : index
      %77 = vector.load %arg3[%c0_72, %c0_73, %c0_74] : memref<2x8x256xf32, #tpu.memory_space<vmem>>, vector<1x8x256xf32>
      %78 = vector.shape_cast %77 : vector<1x8x256xf32> to vector<8x256xf32>
      %79 = vector.broadcast %54 : vector<8x1xf32> to vector<8x256xf32>
      %80 = arith.subf %78, %79 : vector<8x256xf32>
      %81 = vector.broadcast %76 : vector<8x1xf32> to vector<8x256xf32>
      %82 = arith.mulf %80, %81 : vector<8x256xf32>
      %cst_75 = arith.constant 0.000000e+00 : f32
      %83 = vector.broadcast %cst_75 : f32 to vector<8x256xf32>
      %84 = arith.maximumf %82, %83 : vector<8x256xf32>
      %c0_76 = arith.constant 0 : index
      %c0_77 = arith.constant 0 : index
      %c0_78 = arith.constant 0 : index
      %85 = vector.load %arg3[%c0_76, %c0_77, %c0_78] : memref<2x8x256xf32, #tpu.memory_space<vmem>>, vector<1x8x256xf32>
      %86 = vector.shape_cast %85 : vector<1x8x256xf32> to vector<8x256xf32>
      %87 = vector.shape_cast %84 : vector<8x256xf32> to vector<1x8x256xf32>
      tpu.vector_store %arg3[%c0_76, %c0_77, %c0_78], %87 {strides = array<i32>} : memref<2x8x256xf32, #tpu.memory_space<vmem>>, vector<1x8x256xf32>,
      %c1_79 = arith.constant 1 : index
      %c0_80 = arith.constant 0 : index
      %c0_81 = arith.constant 0 : index
      %88 = vector.load %arg3[%c1_79, %c0_80, %c0_81] : memref<2x8x256xf32, #tpu.memory_space<vmem>>, vector<1x8x256xf32>
      %89 = vector.shape_cast %88 : vector<1x8x256xf32> to vector<8x256xf32>
      %90 = vector.broadcast %54 : vector<8x1xf32> to vector<8x256xf32>
      %91 = arith.subf %89, %90 : vector<8x256xf32>
      %92 = vector.broadcast %76 : vector<8x1xf32> to vector<8x256xf32>
      %93 = arith.mulf %91, %92 : vector<8x256xf32>
      %cst_82 = arith.constant 0.000000e+00 : f32
      %94 = vector.broadcast %cst_82 : f32 to vector<8x256xf32>
      %95 = arith.maximumf %93, %94 : vector<8x256xf32>
      %c1_83 = arith.constant 1 : index
      %c0_84 = arith.constant 0 : index
      %c0_85 = arith.constant 0 : index
      %96 = vector.load %arg3[%c1_83, %c0_84, %c0_85] : memref<2x8x256xf32, #tpu.memory_space<vmem>>, vector<1x8x256xf32>
      %97 = vector.shape_cast %96 : vector<1x8x256xf32> to vector<8x256xf32>
      %98 = vector.shape_cast %95 : vector<8x256xf32> to vector<1x8x256xf32>
      tpu.vector_store %arg3[%c1_83, %c0_84, %c0_85], %98 {strides = array<i32>} : memref<2x8x256xf32, #tpu.memory_space<vmem>>, vector<1x8x256xf32>,
    } else {
    }
    return
  }
  func.func @transform_0(%arg0: i32) -> (i32, i32, i32, i32) {
    %c0_i32 = arith.constant 0 : i32
    %c0_i32_0 = arith.constant 0 : i32
    %c0_i32_1 = arith.constant 0 : i32
    %c0_i32_2 = arith.constant 0 : i32
    return %arg0, %c0_i32, %c0_i32_0, %c0_i32_1 : i32, i32, i32, i32
  }
  func.func @transform_1(%arg0: i32) -> (i32, i32) {
    %c0_i32 = arith.constant 0 : i32
    %c0_i32_0 = arith.constant 0 : i32
    %c0_i32_1 = arith.constant 0 : i32
    return %c0_i32, %c0_i32_0 : i32, i32
  }
  func.func @transform_2(%arg0: i32) -> (i32, i32, i32) {
    %c0_i32 = arith.constant 0 : i32
    %c0_i32_0 = arith.constant 0 : i32
    %c0_i32_1 = arith.constant 0 : i32
    %c0_i32_2 = arith.constant 0 : i32
    return %c0_i32, %c0_i32_0, %c0_i32_1 : i32, i32, i32
  }
}

</mosaic_0001>

<llo_original>
// kernel: basic_layer_forward.1
$region0: #{basic_layer_forward.1}
  #allocation0 [shape = 'u32[]', space=smem, size = 0x4, offset = 0x4, fixed_abs, tag = 'smem constant byte address 0x4 - core index']
  #allocation1 [shape = 'u32[144,128]{1,0:T(1,128)}', space=vmem, size = 0x12000, scoped, tag = 'internal scratch']
  #allocation2 [shape = 'f32[18,18,4]{2,1,0:T(8,128)}', space=vmem, size = 0x36000, scoped, tag = 'scratch operand']
  #allocation3 [shape = 'f32[256,36]{1,0:T(8,128)}', space=vmem, size = 0x20000, scoped, tag = 'scratch operand']
  %s0 = inlined_call_operand.vmem [shape: f32[2,16,16,4], index: 0, kind: input, shape index: {}]
  %s1 = inlined_call_operand.vmem [shape: f32[8,36], index: 1, kind: input, shape index: {}]
  %s2 = inlined_call_operand.vmem [shape: f32[2,8,256], index: 2, kind: output, shape index: {}]
  %s3 = sld [smem:[#allocation0]]
  $region45: #{basic_layer_forward.1} parent=0
    _
  %s5 = ssub.s32 1, %s3
  %s6 = scalar_select 0, %s5, %s3
  loop: start=0, step=1, limit=4
  $region2: #{basic_layer_forward.1} parent=0 // loop_pre_header
    _
  $region3: #{basic_layer_forward.1} parent=0 // loop_header
    %s8 = sphi 0, %s12
    %p9 = scmp.ge.s32.totalorder %s8, 4
    %s18 = sphi 0, %s20
    %s21 = sphi 0, %s18
    %s22 = sphi 0, %s21
    %s38 = sphi 0, %s22
    %s42 = sphi 0, %s42
    %s44 = sphi 0, %s42
    %s45 = sphi 0, %s44
    %s59 = sphi 0, %s45
    %s63 = sphi 0, %s63
    %s65 = sphi 0, %s63
    %s66 = sphi 0, %s65
    %s80 = sphi 0, %s66
  $region4: #{basic_layer_forward.1} parent=0 // loop_header_branch
    %11 = sbr.rel (%p9) target = $region8
  $region5: #{basic_layer_forward.1} parent=0 // loop_body
    %s13 = ssub.s32 %s8, 1
    %s14 = ssub.s32 %s8, 2
    %s15 = sadd.s32 %s8, 1
    %s16 = ssub.s32 %s8, %s15
    %p17 = scmp.eq.s32.totalorder %s16, 0
    %s19 = sadd.s32 %s18, 1
    %s20 = scalar_select %p17, %s18, %s19
    %p23 = pneg %p17
    %p24 = scmp.eq.s32.totalorder %s8, 1
    %p25 = por %p23, %p24
    %p26 = scmp.ne.s32.totalorder %s18, %s21
    %p27 = scmp.eq.s32.totalorder %s8, 0
    %p28 = por %p26, %p27
    %p29 = scmp.ne.s32.totalorder %s18, %s21
    %p30 = scmp.eq.s32.totalorder %s13, 1
    %p31 = por %p29, %p30
    %p32 = scmp.ne.s32.totalorder %s21, %s22
    %p33 = scmp.eq.s32.totalorder %s13, 0
    %p34 = por %p32, %p33
    %p35 = scmp.ne.s32.totalorder %s21, %s22
    %p36 = scmp.eq.s32.totalorder %s14, 1
    %p37 = por %p35, %p36
    %p39 = scmp.ne.s32.totalorder %s22, %s38
    %p40 = scmp.eq.s32.totalorder %s14, 0
    %p41 = por %p39, %p40
    %s43 = sadd.s32 %s42, 1
    %p46 = scmp.eq.s32.totalorder %s8, 1
    %p47 = scmp.ne.s32.totalorder %s42, %s44
    %p48 = scmp.eq.s32.totalorder %s8, 0
    %p49 = por %p47, %p48
    %p50 = scmp.ne.s32.totalorder %s42, %s44
    %p51 = scmp.eq.s32.totalorder %s13, 1
    %p52 = por %p50, %p51
    %p53 = scmp.ne.s32.totalorder %s44, %s45
    %p54 = scmp.eq.s32.totalorder %s13, 0
    %p55 = por %p53, %p54
    %p56 = scmp.ne.s32.totalorder %s44, %s45
    %p57 = scmp.eq.s32.totalorder %s14, 1
    %p58 = por %p56, %p57
    %p60 = scmp.ne.s32.totalorder %s45, %s59
    %p61 = scmp.eq.s32.totalorder %s14, 0
    %p62 = por %p60, %p61
    %s64 = sadd.s32 %s63, 1
    %p67 = scmp.eq.s32.totalorder %s8, 1
    %p68 = scmp.ne.s32.totalorder %s63, %s65
    %p69 = scmp.eq.s32.totalorder %s8, 0
    %p70 = por %p68, %p69
    %p71 = scmp.ne.s32.totalorder %s63, %s65
    %p72 = scmp.eq.s32.totalorder %s13, 1
    %p73 = por %p71, %p72
    %p74 = scmp.ne.s32.totalorder %s65, %s66
    %p75 = scmp.eq.s32.totalorder %s13, 0
    %p76 = por %p74, %p75
    %p77 = scmp.ne.s32.totalorder %s65, %s66
    %p78 = scmp.eq.s32.totalorder %s14, 1
    %p79 = por %p77, %p78
    %p81 = scmp.ne.s32.totalorder %s66, %s80
    %p82 = scmp.eq.s32.totalorder %s14, 0
    %p83 = por %p81, %p82
    %p84 = scmp.le.s32.totalorder 1, %s8
    %p85 = scmp.lt.s32.totalorder %s8, 3
    %p86 = pnand %p84, %p85
    %p87 = pneg %p86
    // Predicated region
    $region9: #{basic_layer_forward.1} parent=5 // pred_check
      _
    $region10: #{basic_layer_forward.1} parent=5 // pred_check_branch
      %89 = sbr.rel (%p86) target = $region12
    $region11: #{basic_layer_forward.1} parent=5 // pred_region
      %s90 = ssub.s32 %s8, 1
      // Predicated region
      $region13: #{basic_layer_forward.1} parent=11 // pred_check
        %p91 = pneg %p55
      $region14: #{basic_layer_forward.1} parent=11 // pred_check_branch
        %93 = sbr.rel (%p91) target = $region16
      $region15: #{basic_layer_forward.1} parent=11 // pred_region
        _
      $region16: #{basic_layer_forward.1} parent=11 // pred_fallthru
        _
    $region12: #{basic_layer_forward.1} parent=5 // pred_fallthru
      _
    %p94 = scmp.lt.s32.totalorder %s8, 2
    // Predicated region
    $region17: #{basic_layer_forward.1} parent=5 // pred_check
      %p95 = pneg %p94
    $region18: #{basic_layer_forward.1} parent=5 // pred_check_branch
      %97 = sbr.rel (%p95) target = $region20
    $region19: #{basic_layer_forward.1} parent=5 // pred_region
      // Predicated region
      $region21: #{basic_layer_forward.1} parent=19 // pred_check
        %p98 = pneg %p28
      $region22: #{basic_layer_forward.1} parent=19 // pred_check_branch
        %100 = sbr.rel (%p98) target = $region24
      $region23: #{basic_layer_forward.1} parent=19 // pred_region
        %p101 = scmp.lt.s32.totalorder %s8, 1
        %s102 = scalar_select %p101, %s8, 1
        %s103 = smul.addr %s102, 32
        %s104 = smul.addr %s103, 8
        %s105 = scalar_lea.vmem %s0, %s104
      $region24: #{basic_layer_forward.1} parent=19 // pred_fallthru
        _
    $region20: #{basic_layer_forward.1} parent=5 // pred_fallthru
      _
    %p106 = scmp.le.s32.totalorder 1, %s8
    %p107 = scmp.lt.s32.totalorder %s8, 3
    %p108 = pnand %p106, %p107
    %p109 = pneg %p108
    // Predicated region
    $region25: #{basic_layer_forward.1} parent=5 // pred_check
      _
    $region26: #{basic_layer_forward.1} parent=5 // pred_check_branch
      %111 = sbr.rel (%p108) target = $region28
    $region27: #{basic_layer_forward.1} parent=5 // pred_region
      %s112 = ssub.s32 %s8, 1
      %p113 = scmp.lt.s32.totalorder %s13, 1
      %s114 = scalar_select %p113, %s13, 1
      %s115 = smul.addr %s114, 32
      %s116 = smul.addr %s115, 8
      %s117 = scalar_lea.vmem %s0, %s116
      %p118 = pneg %p34
      %p119 = pneg %p31
      %p120 = pneg %p55
      %p121 = pneg %p52
      %p122 = pneg %p76
      %p123 = pneg %p73
      %p124 = scmp.lt.s32.totalorder %s13, 1
      %s125 = scalar_select %p124, %s13, 1
      %s126 = smul.addr %s125, 32
      %s127 = smul.addr %s126, 8
      %s128 = scalar_lea.vmem %s0, %s127
      %vm129 = vcmask 31744
      %130 = vst.msk [vmem:[#allocation2] sm:$0xff] %vm129, 0.0
      %131 = vst.msk [vmem:[#allocation2 + $0x8] sm:$0xff] %vm129, 0.0
      %vm132 = vcmask 25600
      %133 = vst.msk [vmem:[#allocation2 + $0x10] sm:$0x3] %vm132, 0.0
      %134 = vst.msk [vmem:[#allocation2 + $0x18] sm:$0xff] %vm129, 0.0
      %135 = vst.msk [vmem:[#allocation2 + $0x20] sm:$0xff] %vm129, 0.0
      %136 = vst.msk [vmem:[#allocation2 + $0x28] sm:$0x3] %vm132, 0.0
      %137 = vst.msk [vmem:[#allocation2 + $0x30] sm:$0xff] %vm129, 0.0
      %138 = vst.msk [vmem:[#allocation2 + $0x38] sm:$0xff] %vm129, 0.0
      %139 = vst.msk [vmem:[#allocation2 + $0x40] sm:$0x3] %vm132, 0.0
      %140 = vst.msk [vmem:[#allocation2 + $0x48] sm:$0xff] %vm129, 0.0
      %141 = vst.msk [vmem:[#allocation2 + $0x50] sm:$0xff] %vm129, 0.0
      %142 = vst.msk [vmem:[#allocation2 + $0x58] sm:$0x3] %vm132, 0.0
      %143 = vst.msk [vmem:[#allocation2 + $0x60] sm:$0xff] %vm129, 0.0
      %144 = vst.msk [vmem:[#allocation2 + $0x68] sm:$0xff] %vm129, 0.0
      %145 = vst.msk [vmem:[#allocation2 + $0x70] sm:$0x3] %vm132, 0.0
      %146 = vst.msk [vmem:[#allocation2 + $0x78] sm:$0xff] %vm129, 0.0
      %147 = vst.msk [vmem:[#allocation2 + $0x80] sm:$0xff] %vm129, 0.0
      %148 = vst.msk [vmem:[#allocation2 + $0x88] sm:$0x3] %vm132, 0.0
      %149 = vst.msk [vmem:[#allocation2 + $0x90] sm:$0xff] %vm129, 0.0
      %150 = vst.msk [vmem:[#allocation2 + $0x98] sm:$0xff] %vm129, 0.0
      %151 = vst.msk [vmem:[#allocation2 + $0xa0] sm:$0x3] %vm132, 0.0
      %152 = vst.msk [vmem:[#allocation2 + $0xa8] sm:$0xff] %vm129, 0.0
      %153 = vst.msk [vmem:[#allocation2 + $0xb0] sm:$0xff] %vm129, 0.0
      %154 = vst.msk [vmem:[#allocation2 + $0xb8] sm:$0x3] %vm132, 0.0
      %155 = vst.msk [vmem:[#allocation2 + $0xc0] sm:$0xff] %vm129, 0.0
      %156 = vst.msk [vmem:[#allocation2 + $0xc8] sm:$0xff] %vm129, 0.0
      %157 = vst.msk [vmem:[#allocation2 + $0xd0] sm:$0x3] %vm132, 0.0
      %158 = vst.msk [vmem:[#allocation2 + $0xd8] sm:$0xff] %vm129, 0.0
      %159 = vst.msk [vmem:[#allocation2 + $0xe0] sm:$0xff] %vm129, 0.0
      %160 = vst.msk [vmem:[#allocation2 + $0xe8] sm:$0x3] %vm132, 0.0
      %161 = vst.msk [vmem:[#allocation2 + $0xf0] sm:$0xff] %vm129, 0.0
      %162 = vst.msk [vmem:[#allocation2 + $0xf8] sm:$0xff] %vm129, 0.0
      %163 = vst.msk [vmem:[#allocation2 + $0x100] sm:$0x3] %vm132, 0.0
      %164 = vst.msk [vmem:[#allocation2 + $0x108] sm:$0xff] %vm129, 0.0
      %165 = vst.msk [vmem:[#allocation2 + $0x110] sm:$0xff] %vm129, 0.0
      %166 = vst.msk [vmem:[#allocation2 + $0x118] sm:$0x3] %vm132, 0.0
      %167 = vst.msk [vmem:[#allocation2 + $0x120] sm:$0xff] %vm129, 0.0
      %168 = vst.msk [vmem:[#allocation2 + $0x128] sm:$0xff] %vm129, 0.0
      %169 = vst.msk [vmem:[#allocation2 + $0x130] sm:$0x3] %vm132, 0.0
      %170 = vst.msk [vmem:[#allocation2 + $0x138] sm:$0xff] %vm129, 0.0
      %171 = vst.msk [vmem:[#allocation2 + $0x140] sm:$0xff] %vm129, 0.0
      %172 = vst.msk [vmem:[#allocation2 + $0x148] sm:$0x3] %vm132, 0.0
      %173 = vst.msk [vmem:[#allocation2 + $0x150] sm:$0xff] %vm129, 0.0
      %174 = vst.msk [vmem:[#allocation2 + $0x158] sm:$0xff] %vm129, 0.0
      %175 = vst.msk [vmem:[#allocation2 + $0x160] sm:$0x3] %vm132, 0.0
      %176 = vst.msk [vmem:[#allocation2 + $0x168] sm:$0xff] %vm129, 0.0
      %177 = vst.msk [vmem:[#allocation2 + $0x170] sm:$0xff] %vm129, 0.0
      %178 = vst.msk [vmem:[#allocation2 + $0x178] sm:$0x3] %vm132, 0.0
      %179 = vst.msk [vmem:[#allocation2 + $0x180] sm:$0xff] %vm129, 0.0
      %180 = vst.msk [vmem:[#allocation2 + $0x188] sm:$0xff] %vm129, 0.0
      %181 = vst.msk [vmem:[#allocation2 + $0x190] sm:$0x3] %vm132, 0.0
      %182 = vst.msk [vmem:[#allocation2 + $0x198] sm:$0xff] %vm129, 0.0
      %183 = vst.msk [vmem:[#allocation2 + $0x1a0] sm:$0xff] %vm129, 0.0
      %184 = vst.msk [vmem:[#allocation2 + $0x1a8] sm:$0x3] %vm132, 0.0
      %v185 = vld [vmem:[%s128] sm:$0xff]
      %v186 = vld [vmem:[%s128 + $0x8] sm:$0xff]
      %v187 = vld [vmem:[%s128 + $0x10] sm:$0xff]
      %v188 = vld [vmem:[%s128 + $0x18] sm:$0xff]
      %v189 = vld [vmem:[%s128 + $0x20] sm:$0xff]
      %v190 = vld [vmem:[%s128 + $0x28] sm:$0xff]
      %v191 = vld [vmem:[%s128 + $0x30] sm:$0xff]
      %v192 = vld [vmem:[%s128 + $0x38] sm:$0xff]
      %v193 = vld [vmem:[%s128 + $0x40] sm:$0xff]
      %v194 = vld [vmem:[%s128 + $0x48] sm:$0xff]
      %v195 = vld [vmem:[%s128 + $0x50] sm:$0xff]
      %v196 = vld [vmem:[%s128 + $0x58] sm:$0xff]
      %v197 = vld [vmem:[%s128 + $0x60] sm:$0xff]
      %v198 = vld [vmem:[%s128 + $0x68] sm:$0xff]
      %v199 = vld [vmem:[%s128 + $0x70] sm:$0xff]
      %v200 = vld [vmem:[%s128 + $0x78] sm:$0xff]
      %v201 = vld [vmem:[%s128 + $0x80] sm:$0xff]
      %v202 = vld [vmem:[%s128 + $0x88] sm:$0xff]
      %v203 = vld [vmem:[%s128 + $0x90] sm:$0xff]
      %v204 = vld [vmem:[%s128 + $0x98] sm:$0xff]
      %v205 = vld [vmem:[%s128 + $0xa0] sm:$0xff]
      %v206 = vld [vmem:[%s128 + $0xa8] sm:$0xff]
      %v207 = vld [vmem:[%s128 + $0xb0] sm:$0xff]
      %v208 = vld [vmem:[%s128 + $0xb8] sm:$0xff]
      %v209 = vld [vmem:[%s128 + $0xc0] sm:$0xff]
      %v210 = vld [vmem:[%s128 + $0xc8] sm:$0xff]
      %v211 = vld [vmem:[%s128 + $0xd0] sm:$0xff]
      %v212 = vld [vmem:[%s128 + $0xd8] sm:$0xff]
      %v213 = vld [vmem:[%s128 + $0xe0] sm:$0xff]
      %v214 = vld [vmem:[%s128 + $0xe8] sm:$0xff]
      %v215 = vld [vmem:[%s128 + $0xf0] sm:$0xff]
      %v216 = vld [vmem:[%s128 + $0xf8] sm:$0xff]
      %s217 = scalar_lea.vmem [#allocation2], 24
      %218 = vst.msk [vmem:[%s217 + $0x1] sm:$0xff] %vm129, %v185
      %219 = vst.msk [vmem:[%s217 + $0x9] sm:$0xff] %vm129, %v186
      %220 = vst.msk [vmem:[%s217 + $0x19] sm:$0xff] %vm129, %v187
      %221 = vst.msk [vmem:[%s217 + $0x21] sm:$0xff] %vm129, %v188
      %222 = vst.msk [vmem:[%s217 + $0x31] sm:$0xff] %vm129, %v189
      %223 = vst.msk [vmem:[%s217 + $0x39] sm:$0xff] %vm129, %v190
      %224 = vst.msk [vmem:[%s217 + $0x49] sm:$0xff] %vm129, %v191
      %225 = vst.msk [vmem:[%s217 + $0x51] sm:$0xff] %vm129, %v192
      %226 = vst.msk [vmem:[%s217 + $0x61] sm:$0xff] %vm129, %v193
      %227 = vst.msk [vmem:[%s217 + $0x69] sm:$0xff] %vm129, %v194
      %228 = vst.msk [vmem:[%s217 + $0x79] sm:$0xff] %vm129, %v195
      %229 = vst.msk [vmem:[%s217 + $0x81] sm:$0xff] %vm129, %v196
      %230 = vst.msk [vmem:[%s217 + $0x91] sm:$0xff] %vm129, %v197
      %231 = vst.msk [vmem:[%s217 + $0x99] sm:$0xff] %vm129, %v198
      %232 = vst.msk [vmem:[%s217 + $0xa9] sm:$0xff] %vm129, %v199
      %233 = vst.msk [vmem:[%s217 + $0xb1] sm:$0xff] %vm129, %v200
      %234 = vst.msk [vmem:[%s217 + $0xc1] sm:$0xff] %vm129, %v201
      %235 = vst.msk [vmem:[%s217 + $0xc9] sm:$0xff] %vm129, %v202
      %236 = vst.msk [vmem:[%s217 + $0xd9] sm:$0xff] %vm129, %v203
      %237 = vst.msk [vmem:[%s217 + $0xe1] sm:$0xff] %vm129, %v204
      %238 = vst.msk [vmem:[%s217 + $0xf1] sm:$0xff] %vm129, %v205
      %239 = vst.msk [vmem:[%s217 + $0xf9] sm:$0xff] %vm129, %v206
      %240 = vst.msk [vmem:[%s217 + $0x109] sm:$0xff] %vm129, %v207
      %241 = vst.msk [vmem:[%s217 + $0x111] sm:$0xff] %vm129, %v208
      %242 = vst.msk [vmem:[%s217 + $0x121] sm:$0xff] %vm129, %v209
      %243 = vst.msk [vmem:[%s217 + $0x129] sm:$0xff] %vm129, %v210
      %244 = vst.msk [vmem:[%s217 + $0x139] sm:$0xff] %vm129, %v211
      %245 = vst.msk [vmem:[%s217 + $0x141] sm:$0xff] %vm129, %v212
      %246 = vst.msk [vmem:[%s217 + $0x151] sm:$0xff] %vm129, %v213
      %247 = vst.msk [vmem:[%s217 + $0x159] sm:$0xff] %vm129, %v214
      %248 = vst.msk [vmem:[%s217 + $0x169] sm:$0xff] %vm129, %v215
      %249 = vst.msk [vmem:[%s217 + $0x171] sm:$0xff] %vm129, %v216
      %v250 = vld [vmem:[#allocation2] sm:$0xff]
      %v251 = vld [vmem:[#allocation2 + $0x8] sm:$0xff]
      %v252 = vld [vmem:[#allocation2 + $0x18] sm:$0xff]
      %v253 = vld [vmem:[#allocation2 + $0x20] sm:$0xff]
      %v254 = vld [vmem:[#allocation2 + $0x30] sm:$0xff]
      %v255 = vld [vmem:[#allocation2 + $0x38] sm:$0xff]
      %v256 = vld [vmem:[#allocation2 + $0x48] sm:$0xff]
      %v257 = vld [vmem:[#allocation2 + $0x50] sm:$0xff]
      %v258 = vld [vmem:[#allocation2 + $0x60] sm:$0xff]
      %v259 = vld [vmem:[#allocation2 + $0x68] sm:$0xff]
      %v260 = vld [vmem:[#allocation2 + $0x78] sm:$0xff]
      %v261 = vld [vmem:[#allocation2 + $0x80] sm:$0xff]
      %v262 = vld [vmem:[#allocation2 + $0x90] sm:$0xff]
      %v263 = vld [vmem:[#allocation2 + $0x98] sm:$0xff]
      %v264 = vld [vmem:[#allocation2 + $0xa8] sm:$0xff]
      %v265 = vld [vmem:[#allocation2 + $0xb0] sm:$0xff]
      %v266 = vld [vmem:[#allocation2 + $0xc0] sm:$0xff]
      %v267 = vld [vmem:[#allocation2 + $0xc8] sm:$0xff]
      %v268 = vld [vmem:[#allocation2 + $0xd8] sm:$0xff]
      %v269 = vld [vmem:[#allocation2 + $0xe0] sm:$0xff]
      %v270 = vld [vmem:[#allocation2 + $0xf0] sm:$0xff]
      %v271 = vld [vmem:[#allocation2 + $0xf8] sm:$0xff]
      %v272 = vld [vmem:[#allocation2 + $0x108] sm:$0xff]
      %v273 = vld [vmem:[#allocation2 + $0x110] sm:$0xff]
      %v274 = vld [vmem:[#allocation2 + $0x120] sm:$0xff]
      %v275 = vld [vmem:[#allocation2 + $0x128] sm:$0xff]
      %v276 = vld [vmem:[#allocation2 + $0x138] sm:$0xff]
      %v277 = vld [vmem:[#allocation2 + $0x140] sm:$0xff]
      %v278 = vld [vmem:[#allocation2 + $0x150] sm:$0xff]
      %v279 = vld [vmem:[#allocation2 + $0x158] sm:$0xff]
      %v280 = vld [vmem:[#allocation2 + $0x168] sm:$0xff]
      %v281 = vld [vmem:[#allocation2 + $0x170] sm:$0xff]
      %282 = vst.msk [vmem:[#allocation3] sm:$0xff] %vm129, %v250
      %283 = vst.msk [vmem:[#allocation3 + $0x8] sm:$0xff] %vm129, %v251
      %284 = vst.msk [vmem:[#allocation3 + $0x10] sm:$0xff] %vm129, %v252
      %285 = vst.msk [vmem:[#allocation3 + $0x18] sm:$0xff] %vm129, %v253
      %286 = vst.msk [vmem:[#allocation3 + $0x20] sm:$0xff] %vm129, %v254
      %287 = vst.msk [vmem:[#allocation3 + $0x28] sm:$0xff] %vm129, %v255
      %288 = vst.msk [vmem:[#allocation3 + $0x30] sm:$0xff] %vm129, %v256
      %289 = vst.msk [vmem:[#allocation3 + $0x38] sm:$0xff] %vm129, %v257
      %290 = vst.msk [vmem:[#allocation3 + $0x40] sm:$0xff] %vm129, %v258
      %291 = vst.msk [vmem:[#allocation3 + $0x48] sm:$0xff] %vm129, %v259
      %292 = vst.msk [vmem:[#allocation3 + $0x50] sm:$0xff] %vm129, %v260
      %293 = vst.msk [vmem:[#allocation3 + $0x58] sm:$0xff] %vm129, %v261
      %294 = vst.msk [vmem:[#allocation3 + $0x60] sm:$0xff] %vm129, %v262
      %295 = vst.msk [vmem:[#allocation3 + $0x68] sm:$0xff] %vm129, %v263
      %296 = vst.msk [vmem:[#allocation3 + $0x70] sm:$0xff] %vm129, %v264
      %297 = vst.msk [vmem:[#allocation3 + $0x78] sm:$0xff] %vm129, %v265
      %298 = vst.msk [vmem:[#allocation3 + $0x80] sm:$0xff] %vm129, %v266
      %299 = vst.msk [vmem:[#allocation3 + $0x88] sm:$0xff] %vm129, %v267
      %300 = vst.msk [vmem:[#allocation3 + $0x90] sm:$0xff] %vm129, %v268
      %301 = vst.msk [vmem:[#allocation3 + $0x98] sm:$0xff] %vm129, %v269
      %302 = vst.msk [vmem:[#allocation3 + $0xa0] sm:$0xff] %vm129, %v270
      %303 = vst.msk [vmem:[#allocation3 + $0xa8] sm:$0xff] %vm129, %v271
      %304 = vst.msk [vmem:[#allocation3 + $0xb0] sm:$0xff] %vm129, %v272
      %305 = vst.msk [vmem:[#allocation3 + $0xb8] sm:$0xff] %vm129, %v273
      %306 = vst.msk [vmem:[#allocation3 + $0xc0] sm:$0xff] %vm129, %v274
      %307 = vst.msk [vmem:[#allocation3 + $0xc8] sm:$0xff] %vm129, %v275
      %308 = vst.msk [vmem:[#allocation3 + $0xd0] sm:$0xff] %vm129, %v276
      %309 = vst.msk [vmem:[#allocation3 + $0xd8] sm:$0xff] %vm129, %v277
      %310 = vst.msk [vmem:[#allocation3 + $0xe0] sm:$0xff] %vm129, %v278
      %311 = vst.msk [vmem:[#allocation3 + $0xe8] sm:$0xff] %vm129, %v279
      %312 = vst.msk [vmem:[#allocation3 + $0xf0] sm:$0xff] %vm129, %v280
      %313 = vst.msk [vmem:[#allocation3 + $0xf8] sm:$0xff] %vm129, %v281
      %v314 = vld [vmem:[#allocation2 + $0x1] sm:$0xff]
      %v315 = vld [vmem:[#allocation2 + $0x9] sm:$0xff]
      %v316 = vld [vmem:[#allocation2 + $0x19] sm:$0xff]
      %v317 = vld [vmem:[#allocation2 + $0x21] sm:$0xff]
      %v318 = vld [vmem:[#allocation2 + $0x31] sm:$0xff]
      %v319 = vld [vmem:[#allocation2 + $0x39] sm:$0xff]
      %v320 = vld [vmem:[#allocation2 + $0x49] sm:$0xff]
      %v321 = vld [vmem:[#allocation2 + $0x51] sm:$0xff]
      %v322 = vld [vmem:[#allocation2 + $0x61] sm:$0xff]
      %v323 = vld [vmem:[#allocation2 + $0x69] sm:$0xff]
      %v324 = vld [vmem:[#allocation2 + $0x79] sm:$0xff]
      %v325 = vld [vmem:[#allocation2 + $0x81] sm:$0xff]
      %v326 = vld [vmem:[#allocation2 + $0x91] sm:$0xff]
      %v327 = vld [vmem:[#allocation2 + $0x99] sm:$0xff]
      %v328 = vld [vmem:[#allocation2 + $0xa9] sm:$0xff]
      %v329 = vld [vmem:[#allocation2 + $0xb1] sm:$0xff]
      %v330 = vld [vmem:[#allocation2 + $0xc1] sm:$0xff]
      %v331 = vld [vmem:[#allocation2 + $0xc9] sm:$0xff]
      %v332 = vld [vmem:[#allocation2 + $0xd9] sm:$0xff]
      %v333 = vld [vmem:[#allocation2 + $0xe1] sm:$0xff]
      %v334 = vld [vmem:[#allocation2 + $0xf1] sm:$0xff]
      %v335 = vld [vmem:[#allocation2 + $0xf9] sm:$0xff]
      %v336 = vld [vmem:[#allocation2 + $0x109] sm:$0xff]
      %v337 = vld [vmem:[#allocation2 + $0x111] sm:$0xff]
      %v338 = vld [vmem:[#allocation2 + $0x121] sm:$0xff]
      %v339 = vld [vmem:[#allocation2 + $0x129] sm:$0xff]
      %v340 = vld [vmem:[#allocation2 + $0x139] sm:$0xff]
      %v341 = vld [vmem:[#allocation2 + $0x141] sm:$0xff]
      %v342 = vld [vmem:[#allocation2 + $0x151] sm:$0xff]
      %v343 = vld [vmem:[#allocation2 + $0x159] sm:$0xff]
      %v344 = vld [vmem:[#allocation2 + $0x169] sm:$0xff]
      %v345 = vld [vmem:[#allocation2 + $0x171] sm:$0xff]
      %378 = vrot.lane.b32.xlu0 %v314, 4
      %v379 = vpop.permute.xlu0 %378
      %380 = vrot.lane.b32.xlu0 %v315, 4
      %v381 = vpop.permute.xlu0 %380
      %382 = vrot.lane.b32.xlu0 %v316, 4
      %v383 = vpop.permute.xlu0 %382
      %384 = vrot.lane.b32.xlu0 %v317, 4
      %v385 = vpop.permute.xlu0 %384
      %386 = vrot.lane.b32.xlu0 %v318, 4
      %v387 = vpop.permute.xlu0 %386
      %388 = vrot.lane.b32.xlu0 %v319, 4
      %v389 = vpop.permute.xlu0 %388
      %390 = vrot.lane.b32.xlu0 %v320, 4
      %v391 = vpop.permute.xlu0 %390
      %392 = vrot.lane.b32.xlu0 %v321, 4
      %v393 = vpop.permute.xlu0 %392
      %394 = vrot.lane.b32.xlu0 %v322, 4
      %v395 = vpop.permute.xlu0 %394
      %396 = vrot.lane.b32.xlu0 %v323, 4
      %v397 = vpop.permute.xlu0 %396
      %398 = vrot.lane.b32.xlu0 %v324, 4
      %v399 = vpop.permute.xlu0 %398
      %400 = vrot.lane.b32.xlu0 %v325, 4
      %v401 = vpop.permute.xlu0 %400
      %402 = vrot.lane.b32.xlu0 %v326, 4
      %v403 = vpop.permute.xlu0 %402
      %404 = vrot.lane.b32.xlu0 %v327, 4
      %v405 = vpop.permute.xlu0 %404
      %406 = vrot.lane.b32.xlu0 %v328, 4
      %v407 = vpop.permute.xlu0 %406
      %408 = vrot.lane.b32.xlu0 %v329, 4
      %v409 = vpop.permute.xlu0 %408
      %410 = vrot.lane.b32.xlu0 %v330, 4
      %v411 = vpop.permute.xlu0 %410
      %412 = vrot.lane.b32.xlu0 %v331, 4
      %v413 = vpop.permute.xlu0 %412
      %414 = vrot.lane.b32.xlu0 %v332, 4
      %v415 = vpop.permute.xlu0 %414
      %416 = vrot.lane.b32.xlu0 %v333, 4
      %v417 = vpop.permute.xlu0 %416
      %418 = vrot.lane.b32.xlu0 %v334, 4
      %v419 = vpop.permute.xlu0 %418
      %420 = vrot.lane.b32.xlu0 %v335, 4
      %v421 = vpop.permute.xlu0 %420
      %422 = vrot.lane.b32.xlu0 %v336, 4
      %v423 = vpop.permute.xlu0 %422
      %424 = vrot.lane.b32.xlu0 %v337, 4
      %v425 = vpop.permute.xlu0 %424
      %426 = vrot.lane.b32.xlu0 %v338, 4
      %v427 = vpop.permute.xlu0 %426
      %428 = vrot.lane.b32.xlu0 %v339, 4
      %v429 = vpop.permute.xlu0 %428
      %430 = vrot.lane.b32.xlu0 %v340, 4
      %v431 = vpop.permute.xlu0 %430
      %432 = vrot.lane.b32.xlu0 %v341, 4
      %v433 = vpop.permute.xlu0 %432
      %434 = vrot.lane.b32.xlu0 %v342, 4
      %v435 = vpop.permute.xlu0 %434
      %436 = vrot.lane.b32.xlu0 %v343, 4
      %v437 = vpop.permute.xlu0 %436
      %438 = vrot.lane.b32.xlu0 %v344, 4
      %v439 = vpop.permute.xlu0 %438
      %440 = vrot.lane.b32.xlu0 %v345, 4
      %v441 = vpop.permute.xlu0 %440
      %vm474 = vcmask 64544
      %475 = vst.msk [vmem:[#allocation3] sm:$0xff] %vm474, %v379
      %476 = vst.msk [vmem:[#allocation3 + $0x8] sm:$0xff] %vm474, %v381
      %477 = vst.msk [vmem:[#allocation3 + $0x10] sm:$0xff] %vm474, %v383
      %478 = vst.msk [vmem:[#allocation3 + $0x18] sm:$0xff] %vm474, %v385
      %479 = vst.msk [vmem:[#allocation3 + $0x20] sm:$0xff] %vm474, %v387
      %480 = vst.msk [vmem:[#allocation3 + $0x28] sm:$0xff] %vm474, %v389
      %481 = vst.msk [vmem:[#allocation3 + $0x30] sm:$0xff] %vm474, %v391
      %482 = vst.msk [vmem:[#allocation3 + $0x38] sm:$0xff] %vm474, %v393
      %483 = vst.msk [vmem:[#allocation3 + $0x40] sm:$0xff] %vm474, %v395
      %484 = vst.msk [vmem:[#allocation3 + $0x48] sm:$0xff] %vm474, %v397
      %485 = vst.msk [vmem:[#allocation3 + $0x50] sm:$0xff] %vm474, %v399
      %486 = vst.msk [vmem:[#allocation3 + $0x58] sm:$0xff] %vm474, %v401
      %487 = vst.msk [vmem:[#allocation3 + $0x60] sm:$0xff] %vm474, %v403
      %488 = vst.msk [vmem:[#allocation3 + $0x68] sm:$0xff] %vm474, %v405
      %489 = vst.msk [vmem:[#allocation3 + $0x70] sm:$0xff] %vm474, %v407
      %490 = vst.msk [vmem:[#allocation3 + $0x78] sm:$0xff] %vm474, %v409
      %491 = vst.msk [vmem:[#allocation3 + $0x80] sm:$0xff] %vm474, %v411
      %492 = vst.msk [vmem:[#allocation3 + $0x88] sm:$0xff] %vm474, %v413
      %493 = vst.msk [vmem:[#allocation3 + $0x90] sm:$0xff] %vm474, %v415
      %494 = vst.msk [vmem:[#allocation3 + $0x98] sm:$0xff] %vm474, %v417
      %495 = vst.msk [vmem:[#allocation3 + $0xa0] sm:$0xff] %vm474, %v419
      %496 = vst.msk [vmem:[#allocation3 + $0xa8] sm:$0xff] %vm474, %v421
      %497 = vst.msk [vmem:[#allocation3 + $0xb0] sm:$0xff] %vm474, %v423
      %498 = vst.msk [vmem:[#allocation3 + $0xb8] sm:$0xff] %vm474, %v425
      %499 = vst.msk [vmem:[#allocation3 + $0xc0] sm:$0xff] %vm474, %v427
      %500 = vst.msk [vmem:[#allocation3 + $0xc8] sm:$0xff] %vm474, %v429
      %501 = vst.msk [vmem:[#allocation3 + $0xd0] sm:$0xff] %vm474, %v431
      %502 = vst.msk [vmem:[#allocation3 + $0xd8] sm:$0xff] %vm474, %v433
      %503 = vst.msk [vmem:[#allocation3 + $0xe0] sm:$0xff] %vm474, %v435
      %504 = vst.msk [vmem:[#allocation3 + $0xe8] sm:$0xff] %vm474, %v437
      %505 = vst.msk [vmem:[#allocation3 + $0xf0] sm:$0xff] %vm474, %v439
      %506 = vst.msk [vmem:[#allocation3 + $0xf8] sm:$0xff] %vm474, %v441
      %v507 = vld [vmem:[#allocation2 + $0x2] sm:$0xff]
      %v508 = vld [vmem:[#allocation2 + $0xa] sm:$0xff]
      %v509 = vld [vmem:[#allocation2 + $0x1a] sm:$0xff]
      %v510 = vld [vmem:[#allocation2 + $0x22] sm:$0xff]
      %v511 = vld [vmem:[#allocation2 + $0x32] sm:$0xff]
      %v512 = vld [vmem:[#allocation2 + $0x3a] sm:$0xff]
      %v513 = vld [vmem:[#allocation2 + $0x4a] sm:$0xff]
      %v514 = vld [vmem:[#allocation2 + $0x52] sm:$0xff]
      %v515 = vld [vmem:[#allocation2 + $0x62] sm:$0xff]
      %v516 = vld [vmem:[#allocation2 + $0x6a] sm:$0xff]
      %v517 = vld [vmem:[#allocation2 + $0x7a] sm:$0xff]
      %v518 = vld [vmem:[#allocation2 + $0x82] sm:$0xff]
      %v519 = vld [vmem:[#allocation2 + $0x92] sm:$0xff]
      %v520 = vld [vmem:[#allocation2 + $0x9a] sm:$0xff]
      %v521 = vld [vmem:[#allocation2 + $0xaa] sm:$0xff]
      %v522 = vld [vmem:[#allocation2 + $0xb2] sm:$0xff]
      %v523 = vld [vmem:[#allocation2 + $0xc2] sm:$0xff]
      %v524 = vld [vmem:[#allocation2 + $0xca] sm:$0xff]
      %v525 = vld [vmem:[#allocation2 + $0xda] sm:$0xff]
      %v526 = vld [vmem:[#allocation2 + $0xe2] sm:$0xff]
      %v527 = vld [vmem:[#allocation2 + $0xf2] sm:$0xff]
      %v528 = vld [vmem:[#allocation2 + $0xfa] sm:$0xff]
      %v529 = vld [vmem:[#allocation2 + $0x10a] sm:$0xff]
      %v530 = vld [vmem:[#allocation2 + $0x112] sm:$0xff]
      %v531 = vld [vmem:[#allocation2 + $0x122] sm:$0xff]
      %v532 = vld [vmem:[#allocation2 + $0x12a] sm:$0xff]
      %v533 = vld [vmem:[#allocation2 + $0x13a] sm:$0xff]
      %v534 = vld [vmem:[#allocation2 + $0x142] sm:$0xff]
      %v535 = vld [vmem:[#allocation2 + $0x152] sm:$0xff]
      %v536 = vld [vmem:[#allocation2 + $0x15a] sm:$0xff]
      %v537 = vld [vmem:[#allocation2 + $0x16a] sm:$0xff]
      %v538 = vld [vmem:[#allocation2 + $0x172] sm:$0xff]
      %571 = vrot.lane.b32.xlu0 %v507, 8
      %v572 = vpop.permute.xlu0 %571
      %573 = vrot.lane.b32.xlu0 %v508, 8
      %v574 = vpop.permute.xlu0 %573
      %575 = vrot.lane.b32.xlu0 %v509, 8
      %v576 = vpop.permute.xlu0 %575
      %577 = vrot.lane.b32.xlu0 %v510, 8
      %v578 = vpop.permute.xlu0 %577
      %579 = vrot.lane.b32.xlu0 %v511, 8
      %v580 = vpop.permute.xlu0 %579
      %581 = vrot.lane.b32.xlu0 %v512, 8
      %v582 = vpop.permute.xlu0 %581
      %583 = vrot.lane.b32.xlu0 %v513, 8
      %v584 = vpop.permute.xlu0 %583
      %585 = vrot.lane.b32.xlu0 %v514, 8
      %v586 = vpop.permute.xlu0 %585
      %587 = vrot.lane.b32.xlu0 %v515, 8
      %v588 = vpop.permute.xlu0 %587
      %589 = vrot.lane.b32.xlu0 %v516, 8
      %v590 = vpop.permute.xlu0 %589
      %591 = vrot.lane.b32.xlu0 %v517, 8
      %v592 = vpop.permute.xlu0 %591
      %593 = vrot.lane.b32.xlu0 %v518, 8
      %v594 = vpop.permute.xlu0 %593
      %595 = vrot.lane.b32.xlu0 %v519, 8
      %v596 = vpop.permute.xlu0 %595
      %597 = vrot.lane.b32.xlu0 %v520, 8
      %v598 = vpop.permute.xlu0 %597
      %599 = vrot.lane.b32.xlu0 %v521, 8
      %v600 = vpop.permute.xlu0 %599
      %601 = vrot.lane.b32.xlu0 %v522, 8
      %v602 = vpop.permute.xlu0 %601
      %603 = vrot.lane.b32.xlu0 %v523, 8
      %v604 = vpop.permute.xlu0 %603
      %605 = vrot.lane.b32.xlu0 %v524, 8
      %v606 = vpop.permute.xlu0 %605
      %607 = vrot.lane.b32.xlu0 %v525, 8
      %v608 = vpop.permute.xlu0 %607
      %609 = vrot.lane.b32.xlu0 %v526, 8
      %v610 = vpop.permute.xlu0 %609
      %611 = vrot.lane.b32.xlu0 %v527, 8
      %v612 = vpop.permute.xlu0 %611
      %613 = vrot.lane.b32.xlu0 %v528, 8
      %v614 = vpop.permute.xlu0 %613
      %615 = vrot.lane.b32.xlu0 %v529, 8
      %v616 = vpop.permute.xlu0 %615
      %617 = vrot.lane.b32.xlu0 %v530, 8
      %v618 = vpop.permute.xlu0 %617
      %619 = vrot.lane.b32.xlu0 %v531, 8
      %v620 = vpop.permute.xlu0 %619
      %621 = vrot.lane.b32.xlu0 %v532, 8
      %v622 = vpop.permute.xlu0 %621
      %623 = vrot.lane.b32.xlu0 %v533, 8
      %v624 = vpop.permute.xlu0 %623
      %625 = vrot.lane.b32.xlu0 %v534, 8
      %v626 = vpop.permute.xlu0 %625
      %627 = vrot.lane.b32.xlu0 %v535, 8
      %v628 = vpop.permute.xlu0 %627
      %629 = vrot.lane.b32.xlu0 %v536, 8
      %v630 = vpop.permute.xlu0 %629
      %631 = vrot.lane.b32.xlu0 %v537, 8
      %v632 = vpop.permute.xlu0 %631
      %633 = vrot.lane.b32.xlu0 %v538, 8
      %v634 = vpop.permute.xlu0 %633
      %vm667 = vcmask 97344
      %668 = vst.msk [vmem:[#allocation3] sm:$0xff] %vm667, %v572
      %669 = vst.msk [vmem:[#allocation3 + $0x8] sm:$0xff] %vm667, %v574
      %670 = vst.msk [vmem:[#allocation3 + $0x10] sm:$0xff] %vm667, %v576
      %671 = vst.msk [vmem:[#allocation3 + $0x18] sm:$0xff] %vm667, %v578
      %672 = vst.msk [vmem:[#allocation3 + $0x20] sm:$0xff] %vm667, %v580
      %673 = vst.msk [vmem:[#allocation3 + $0x28] sm:$0xff] %vm667, %v582
      %674 = vst.msk [vmem:[#allocation3 + $0x30] sm:$0xff] %vm667, %v584
      %675 = vst.msk [vmem:[#allocation3 + $0x38] sm:$0xff] %vm667, %v586
      %676 = vst.msk [vmem:[#allocation3 + $0x40] sm:$0xff] %vm667, %v588
      %677 = vst.msk [vmem:[#allocation3 + $0x48] sm:$0xff] %vm667, %v590
      %678 = vst.msk [vmem:[#allocation3 + $0x50] sm:$0xff] %vm667, %v592
      %679 = vst.msk [vmem:[#allocation3 + $0x58] sm:$0xff] %vm667, %v594
      %680 = vst.msk [vmem:[#allocation3 + $0x60] sm:$0xff] %vm667, %v596
      %681 = vst.msk [vmem:[#allocation3 + $0x68] sm:$0xff] %vm667, %v598
      %682 = vst.msk [vmem:[#allocation3 + $0x70] sm:$0xff] %vm667, %v600
      %683 = vst.msk [vmem:[#allocation3 + $0x78] sm:$0xff] %vm667, %v602
      %684 = vst.msk [vmem:[#allocation3 + $0x80] sm:$0xff] %vm667, %v604
      %685 = vst.msk [vmem:[#allocation3 + $0x88] sm:$0xff] %vm667, %v606
      %686 = vst.msk [vmem:[#allocation3 + $0x90] sm:$0xff] %vm667, %v608
      %687 = vst.msk [vmem:[#allocation3 + $0x98] sm:$0xff] %vm667, %v610
      %688 = vst.msk [vmem:[#allocation3 + $0xa0] sm:$0xff] %vm667, %v612
      %689 = vst.msk [vmem:[#allocation3 + $0xa8] sm:$0xff] %vm667, %v614
      %690 = vst.msk [vmem:[#allocation3 + $0xb0] sm:$0xff] %vm667, %v616
      %691 = vst.msk [vmem:[#allocation3 + $0xb8] sm:$0xff] %vm667, %v618
      %692 = vst.msk [vmem:[#allocation3 + $0xc0] sm:$0xff] %vm667, %v620
      %693 = vst.msk [vmem:[#allocation3 + $0xc8] sm:$0xff] %vm667, %v622
      %694 = vst.msk [vmem:[#allocation3 + $0xd0] sm:$0xff] %vm667, %v624
      %695 = vst.msk [vmem:[#allocation3 + $0xd8] sm:$0xff] %vm667, %v626
      %696 = vst.msk [vmem:[#allocation3 + $0xe0] sm:$0xff] %vm667, %v628
      %697 = vst.msk [vmem:[#allocation3 + $0xe8] sm:$0xff] %vm667, %v630
      %698 = vst.msk [vmem:[#allocation3 + $0xf0] sm:$0xff] %vm667, %v632
      %699 = vst.msk [vmem:[#allocation3 + $0xf8] sm:$0xff] %vm667, %v634
      %v700 = vld [vmem:[%s217] sm:$0xff]
      %v701 = vld [vmem:[%s217 + $0x8] sm:$0xff]
      %v702 = vld [vmem:[%s217 + $0x18] sm:$0xff]
      %v703 = vld [vmem:[%s217 + $0x20] sm:$0xff]
      %v704 = vld [vmem:[%s217 + $0x30] sm:$0xff]
      %v705 = vld [vmem:[%s217 + $0x38] sm:$0xff]
      %v706 = vld [vmem:[%s217 + $0x48] sm:$0xff]
      %v707 = vld [vmem:[%s217 + $0x50] sm:$0xff]
      %v708 = vld [vmem:[%s217 + $0x60] sm:$0xff]
      %v709 = vld [vmem:[%s217 + $0x68] sm:$0xff]
      %v710 = vld [vmem:[%s217 + $0x78] sm:$0xff]
      %v711 = vld [vmem:[%s217 + $0x80] sm:$0xff]
      %v712 = vld [vmem:[%s217 + $0x90] sm:$0xff]
      %v713 = vld [vmem:[%s217 + $0x98] sm:$0xff]
      %v714 = vld [vmem:[%s217 + $0xa8] sm:$0xff]
      %v715 = vld [vmem:[%s217 + $0xb0] sm:$0xff]
      %v716 = vld [vmem:[%s217 + $0xc0] sm:$0xff]
      %v717 = vld [vmem:[%s217 + $0xc8] sm:$0xff]
      %v718 = vld [vmem:[%s217 + $0xd8] sm:$0xff]
      %v719 = vld [vmem:[%s217 + $0xe0] sm:$0xff]
      %v720 = vld [vmem:[%s217 + $0xf0] sm:$0xff]
      %v721 = vld [vmem:[%s217 + $0xf8] sm:$0xff]
      %v722 = vld [vmem:[%s217 + $0x108] sm:$0xff]
      %v723 = vld [vmem:[%s217 + $0x110] sm:$0xff]
      %v724 = vld [vmem:[%s217 + $0x120] sm:$0xff]
      %v725 = vld [vmem:[%s217 + $0x128] sm:$0xff]
      %v726 = vld [vmem:[%s217 + $0x138] sm:$0xff]
      %v727 = vld [vmem:[%s217 + $0x140] sm:$0xff]
      %v728 = vld [vmem:[%s217 + $0x150] sm:$0xff]
      %v729 = vld [vmem:[%s217 + $0x158] sm:$0xff]
      %v730 = vld [vmem:[%s217 + $0x168] sm:$0xff]
      %v731 = vld [vmem:[%s217 + $0x170] sm:$0xff]
      %764 = vrot.lane.b32.xlu0 %v700, 12
      %v765 = vpop.permute.xlu0 %764
      %766 = vrot.lane.b32.xlu0 %v701, 12
      %v767 = vpop.permute.xlu0 %766
      %768 = vrot.lane.b32.xlu0 %v702, 12
      %v769 = vpop.permute.xlu0 %768
      %770 = vrot.lane.b32.xlu0 %v703, 12
      %v771 = vpop.permute.xlu0 %770
      %772 = vrot.lane.b32.xlu0 %v704, 12
      %v773 = vpop.permute.xlu0 %772
      %774 = vrot.lane.b32.xlu0 %v705, 12
      %v775 = vpop.permute.xlu0 %774
      %776 = vrot.lane.b32.xlu0 %v706, 12
      %v777 = vpop.permute.xlu0 %776
      %778 = vrot.lane.b32.xlu0 %v707, 12
      %v779 = vpop.permute.xlu0 %778
      %780 = vrot.lane.b32.xlu0 %v708, 12
      %v781 = vpop.permute.xlu0 %780
      %782 = vrot.lane.b32.xlu0 %v709, 12
      %v783 = vpop.permute.xlu0 %782
      %784 = vrot.lane.b32.xlu0 %v710, 12
      %v785 = vpop.permute.xlu0 %784
      %786 = vrot.lane.b32.xlu0 %v711, 12
      %v787 = vpop.permute.xlu0 %786
      %788 = vrot.lane.b32.xlu0 %v712, 12
      %v789 = vpop.permute.xlu0 %788
      %790 = vrot.lane.b32.xlu0 %v713, 12
      %v791 = vpop.permute.xlu0 %790
      %792 = vrot.lane.b32.xlu0 %v714, 12
      %v793 = vpop.permute.xlu0 %792
      %794 = vrot.lane.b32.xlu0 %v715, 12
      %v795 = vpop.permute.xlu0 %794
      %796 = vrot.lane.b32.xlu0 %v716, 12
      %v797 = vpop.permute.xlu0 %796
      %798 = vrot.lane.b32.xlu0 %v717, 12
      %v799 = vpop.permute.xlu0 %798
      %800 = vrot.lane.b32.xlu0 %v718, 12
      %v801 = vpop.permute.xlu0 %800
      %802 = vrot.lane.b32.xlu0 %v719, 12
      %v803 = vpop.permute.xlu0 %802
      %804 = vrot.lane.b32.xlu0 %v720, 12
      %v805 = vpop.permute.xlu0 %804
      %806 = vrot.lane.b32.xlu0 %v721, 12
      %v807 = vpop.permute.xlu0 %806
      %808 = vrot.lane.b32.xlu0 %v722, 12
      %v809 = vpop.permute.xlu0 %808
      %810 = vrot.lane.b32.xlu0 %v723, 12
      %v811 = vpop.permute.xlu0 %810
      %812 = vrot.lane.b32.xlu0 %v724, 12
      %v813 = vpop.permute.xlu0 %812
      %814 = vrot.lane.b32.xlu0 %v725, 12
      %v815 = vpop.permute.xlu0 %814
      %816 = vrot.lane.b32.xlu0 %v726, 12
      %v817 = vpop.permute.xlu0 %816
      %818 = vrot.lane.b32.xlu0 %v727, 12
      %v819 = vpop.permute.xlu0 %818
      %820 = vrot.lane.b32.xlu0 %v728, 12
      %v821 = vpop.permute.xlu0 %820
      %822 = vrot.lane.b32.xlu0 %v729, 12
      %v823 = vpop.permute.xlu0 %822
      %824 = vrot.lane.b32.xlu0 %v730, 12
      %v825 = vpop.permute.xlu0 %824
      %826 = vrot.lane.b32.xlu0 %v731, 12
      %v827 = vpop.permute.xlu0 %826
      %vm860 = vcmask 130144
      %861 = vst.msk [vmem:[#allocation3] sm:$0xff] %vm860, %v765
      %862 = vst.msk [vmem:[#allocation3 + $0x8] sm:$0xff] %vm860, %v767
      %863 = vst.msk [vmem:[#allocation3 + $0x10] sm:$0xff] %vm860, %v769
      %864 = vst.msk [vmem:[#allocation3 + $0x18] sm:$0xff] %vm860, %v771
      %865 = vst.msk [vmem:[#allocation3 + $0x20] sm:$0xff] %vm860, %v773
      %866 = vst.msk [vmem:[#allocation3 + $0x28] sm:$0xff] %vm860, %v775
      %867 = vst.msk [vmem:[#allocation3 + $0x30] sm:$0xff] %vm860, %v777
      %868 = vst.msk [vmem:[#allocation3 + $0x38] sm:$0xff] %vm860, %v779
      %869 = vst.msk [vmem:[#allocation3 + $0x40] sm:$0xff] %vm860, %v781
      %870 = vst.msk [vmem:[#allocation3 + $0x48] sm:$0xff] %vm860, %v783
      %871 = vst.msk [vmem:[#allocation3 + $0x50] sm:$0xff] %vm860, %v785
      %872 = vst.msk [vmem:[#allocation3 + $0x58] sm:$0xff] %vm860, %v787
      %873 = vst.msk [vmem:[#allocation3 + $0x60] sm:$0xff] %vm860, %v789
      %874 = vst.msk [vmem:[#allocation3 + $0x68] sm:$0xff] %vm860, %v791
      %875 = vst.msk [vmem:[#allocation3 + $0x70] sm:$0xff] %vm860, %v793
      %876 = vst.msk [vmem:[#allocation3 + $0x78] sm:$0xff] %vm860, %v795
      %877 = vst.msk [vmem:[#allocation3 + $0x80] sm:$0xff] %vm860, %v797
      %878 = vst.msk [vmem:[#allocation3 + $0x88] sm:$0xff] %vm860, %v799
      %879 = vst.msk [vmem:[#allocation3 + $0x90] sm:$0xff] %vm860, %v801
      %880 = vst.msk [vmem:[#allocation3 + $0x98] sm:$0xff] %vm860, %v803
      %881 = vst.msk [vmem:[#allocation3 + $0xa0] sm:$0xff] %vm860, %v805
      %882 = vst.msk [vmem:[#allocation3 + $0xa8] sm:$0xff] %vm860, %v807
      %883 = vst.msk [vmem:[#allocation3 + $0xb0] sm:$0xff] %vm860, %v809
      %884 = vst.msk [vmem:[#allocation3 + $0xb8] sm:$0xff] %vm860, %v811
      %885 = vst.msk [vmem:[#allocation3 + $0xc0] sm:$0xff] %vm860, %v813
      %886 = vst.msk [vmem:[#allocation3 + $0xc8] sm:$0xff] %vm860, %v815
      %887 = vst.msk [vmem:[#allocation3 + $0xd0] sm:$0xff] %vm860, %v817
      %888 = vst.msk [vmem:[#allocation3 + $0xd8] sm:$0xff] %vm860, %v819
      %889 = vst.msk [vmem:[#allocation3 + $0xe0] sm:$0xff] %vm860, %v821
      %890 = vst.msk [vmem:[#allocation3 + $0xe8] sm:$0xff] %vm860, %v823
      %891 = vst.msk [vmem:[#allocation3 + $0xf0] sm:$0xff] %vm860, %v825
      %892 = vst.msk [vmem:[#allocation3 + $0xf8] sm:$0xff] %vm860, %v827
      %v893 = vld [vmem:[%s217 + $0x1] sm:$0xff]
      %v894 = vld [vmem:[%s217 + $0x9] sm:$0xff]
      %v895 = vld [vmem:[%s217 + $0x19] sm:$0xff]
      %v896 = vld [vmem:[%s217 + $0x21] sm:$0xff]
      %v897 = vld [vmem:[%s217 + $0x31] sm:$0xff]
      %v898 = vld [vmem:[%s217 + $0x39] sm:$0xff]
      %v899 = vld [vmem:[%s217 + $0x49] sm:$0xff]
      %v900 = vld [vmem:[%s217 + $0x51] sm:$0xff]
      %v901 = vld [vmem:[%s217 + $0x61] sm:$0xff]
      %v902 = vld [vmem:[%s217 + $0x69] sm:$0xff]
      %v903 = vld [vmem:[%s217 + $0x79] sm:$0xff]
      %v904 = vld [vmem:[%s217 + $0x81] sm:$0xff]
      %v905 = vld [vmem:[%s217 + $0x91] sm:$0xff]
      %v906 = vld [vmem:[%s217 + $0x99] sm:$0xff]
      %v907 = vld [vmem:[%s217 + $0xa9] sm:$0xff]
      %v908 = vld [vmem:[%s217 + $0xb1] sm:$0xff]
      %v909 = vld [vmem:[%s217 + $0xc1] sm:$0xff]
      %v910 = vld [vmem:[%s217 + $0xc9] sm:$0xff]
      %v911 = vld [vmem:[%s217 + $0xd9] sm:$0xff]
      %v912 = vld [vmem:[%s217 + $0xe1] sm:$0xff]
      %v913 = vld [vmem:[%s217 + $0xf1] sm:$0xff]
      %v914 = vld [vmem:[%s217 + $0xf9] sm:$0xff]
      %v915 = vld [vmem:[%s217 + $0x109] sm:$0xff]
      %v916 = vld [vmem:[%s217 + $0x111] sm:$0xff]
      %v917 = vld [vmem:[%s217 + $0x121] sm:$0xff]
      %v918 = vld [vmem:[%s217 + $0x129] sm:$0xff]
      %v919 = vld [vmem:[%s217 + $0x139] sm:$0xff]
      %v920 = vld [vmem:[%s217 + $0x141] sm:$0xff]
      %v921 = vld [vmem:[%s217 + $0x151] sm:$0xff]
      %v922 = vld [vmem:[%s217 + $0x159] sm:$0xff]
      %v923 = vld [vmem:[%s217 + $0x169] sm:$0xff]
      %v924 = vld [vmem:[%s217 + $0x171] sm:$0xff]
      %957 = vrot.lane.b32.xlu0 %v893, 16
      %v958 = vpop.permute.xlu0 %957
      %959 = vrot.lane.b32.xlu0 %v894, 16
      %v960 = vpop.permute.xlu0 %959
      %961 = vrot.lane.b32.xlu0 %v895, 16
      %v962 = vpop.permute.xlu0 %961
      %963 = vrot.lane.b32.xlu0 %v896, 16
      %v964 = vpop.permute.xlu0 %963
      %965 = vrot.lane.b32.xlu0 %v897, 16
      %v966 = vpop.permute.xlu0 %965
      %967 = vrot.lane.b32.xlu0 %v898, 16
      %v968 = vpop.permute.xlu0 %967
      %969 = vrot.lane.b32.xlu0 %v899, 16
      %v970 = vpop.permute.xlu0 %969
      %971 = vrot.lane.b32.xlu0 %v900, 16
      %v972 = vpop.permute.xlu0 %971
      %973 = vrot.lane.b32.xlu0 %v901, 16
      %v974 = vpop.permute.xlu0 %973
      %975 = vrot.lane.b32.xlu0 %v902, 16
      %v976 = vpop.permute.xlu0 %975
      %977 = vrot.lane.b32.xlu0 %v903, 16
      %v978 = vpop.permute.xlu0 %977
      %979 = vrot.lane.b32.xlu0 %v904, 16
      %v980 = vpop.permute.xlu0 %979
      %981 = vrot.lane.b32.xlu0 %v905, 16
      %v982 = vpop.permute.xlu0 %981
      %983 = vrot.lane.b32.xlu0 %v906, 16
      %v984 = vpop.permute.xlu0 %983
      %985 = vrot.lane.b32.xlu0 %v907, 16
      %v986 = vpop.permute.xlu0 %985
      %987 = vrot.lane.b32.xlu0 %v908, 16
      %v988 = vpop.permute.xlu0 %987
      %989 = vrot.lane.b32.xlu0 %v909, 16
      %v990 = vpop.permute.xlu0 %989
      %991 = vrot.lane.b32.xlu0 %v910, 16
      %v992 = vpop.permute.xlu0 %991
      %993 = vrot.lane.b32.xlu0 %v911, 16
      %v994 = vpop.permute.xlu0 %993
      %995 = vrot.lane.b32.xlu0 %v912, 16
      %v996 = vpop.permute.xlu0 %995
      %997 = vrot.lane.b32.xlu0 %v913, 16
      %v998 = vpop.permute.xlu0 %997
      %999 = vrot.lane.b32.xlu0 %v914, 16
      %v1000 = vpop.permute.xlu0 %999
      %1001 = vrot.lane.b32.xlu0 %v915, 16
      %v1002 = vpop.permute.xlu0 %1001
      %1003 = vrot.lane.b32.xlu0 %v916, 16
      %v1004 = vpop.permute.xlu0 %1003
      %1005 = vrot.lane.b32.xlu0 %v917, 16
      %v1006 = vpop.permute.xlu0 %1005
      %1007 = vrot.lane.b32.xlu0 %v918, 16
      %v1008 = vpop.permute.xlu0 %1007
      %1009 = vrot.lane.b32.xlu0 %v919, 16
      %v1010 = vpop.permute.xlu0 %1009
      %1011 = vrot.lane.b32.xlu0 %v920, 16
      %v1012 = vpop.permute.xlu0 %1011
      %1013 = vrot.lane.b32.xlu0 %v921, 16
      %v1014 = vpop.permute.xlu0 %1013
      %1015 = vrot.lane.b32.xlu0 %v922, 16
      %v1016 = vpop.permute.xlu0 %1015
      %1017 = vrot.lane.b32.xlu0 %v923, 16
      %v1018 = vpop.permute.xlu0 %1017
      %1019 = vrot.lane.b32.xlu0 %v924, 16
      %v1020 = vpop.permute.xlu0 %1019
      %vm1053 = vcmask 162944
      %1054 = vst.msk [vmem:[#allocation3] sm:$0xff] %vm1053, %v958
      %1055 = vst.msk [vmem:[#allocation3 + $0x8] sm:$0xff] %vm1053, %v960
      %1056 = vst.msk [vmem:[#allocation3 + $0x10] sm:$0xff] %vm1053, %v962
      %1057 = vst.msk [vmem:[#allocation3 + $0x18] sm:$0xff] %vm1053, %v964
      %1058 = vst.msk [vmem:[#allocation3 + $0x20] sm:$0xff] %vm1053, %v966
      %1059 = vst.msk [vmem:[#allocation3 + $0x28] sm:$0xff] %vm1053, %v968
      %1060 = vst.msk [vmem:[#allocation3 + $0x30] sm:$0xff] %vm1053, %v970
      %1061 = vst.msk [vmem:[#allocation3 + $0x38] sm:$0xff] %vm1053, %v972
      %1062 = vst.msk [vmem:[#allocation3 + $0x40] sm:$0xff] %vm1053, %v974
      %1063 = vst.msk [vmem:[#allocation3 + $0x48] sm:$0xff] %vm1053, %v976
      %1064 = vst.msk [vmem:[#allocation3 + $0x50] sm:$0xff] %vm1053, %v978
      %1065 = vst.msk [vmem:[#allocation3 + $0x58] sm:$0xff] %vm1053, %v980
      %1066 = vst.msk [vmem:[#allocation3 + $0x60] sm:$0xff] %vm1053, %v982
      %1067 = vst.msk [vmem:[#allocation3 + $0x68] sm:$0xff] %vm1053, %v984
      %1068 = vst.msk [vmem:[#allocation3 + $0x70] sm:$0xff] %vm1053, %v986
      %1069 = vst.msk [vmem:[#allocation3 + $0x78] sm:$0xff] %vm1053, %v988
      %1070 = vst.msk [vmem:[#allocation3 + $0x80] sm:$0xff] %vm1053, %v990
      %1071 = vst.msk [vmem:[#allocation3 + $0x88] sm:$0xff] %vm1053, %v992
      %1072 = vst.msk [vmem:[#allocation3 + $0x90] sm:$0xff] %vm1053, %v994
      %1073 = vst.msk [vmem:[#allocation3 + $0x98] sm:$0xff] %vm1053, %v996
      %1074 = vst.msk [vmem:[#allocation3 + $0xa0] sm:$0xff] %vm1053, %v998
      %1075 = vst.msk [vmem:[#allocation3 + $0xa8] sm:$0xff] %vm1053, %v1000
      %1076 = vst.msk [vmem:[#allocation3 + $0xb0] sm:$0xff] %vm1053, %v1002
      %1077 = vst.msk [vmem:[#allocation3 + $0xb8] sm:$0xff] %vm1053, %v1004
      %1078 = vst.msk [vmem:[#allocation3 + $0xc0] sm:$0xff] %vm1053, %v1006
      %1079 = vst.msk [vmem:[#allocation3 + $0xc8] sm:$0xff] %vm1053, %v1008
      %1080 = vst.msk [vmem:[#allocation3 + $0xd0] sm:$0xff] %vm1053, %v1010
      %1081 = vst.msk [vmem:[#allocation3 + $0xd8] sm:$0xff] %vm1053, %v1012
      %1082 = vst.msk [vmem:[#allocation3 + $0xe0] sm:$0xff] %vm1053, %v1014
      %1083 = vst.msk [vmem:[#allocation3 + $0xe8] sm:$0xff] %vm1053, %v1016
      %1084 = vst.msk [vmem:[#allocation3 + $0xf0] sm:$0xff] %vm1053, %v1018
      %1085 = vst.msk [vmem:[#allocation3 + $0xf8] sm:$0xff] %vm1053, %v1020
      %v1086 = vld [vmem:[%s217 + $0x2] sm:$0xff]
      %v1087 = vld [vmem:[%s217 + $0xa] sm:$0xff]
      %v1088 = vld [vmem:[%s217 + $0x1a] sm:$0xff]
      %v1089 = vld [vmem:[%s217 + $0x22] sm:$0xff]
      %v1090 = vld [vmem:[%s217 + $0x32] sm:$0xff]
      %v1091 = vld [vmem:[%s217 + $0x3a] sm:$0xff]
      %v1092 = vld [vmem:[%s217 + $0x4a] sm:$0xff]
      %v1093 = vld [vmem:[%s217 + $0x52] sm:$0xff]
      %v1094 = vld [vmem:[%s217 + $0x62] sm:$0xff]
      %v1095 = vld [vmem:[%s217 + $0x6a] sm:$0xff]
      %v1096 = vld [vmem:[%s217 + $0x7a] sm:$0xff]
      %v1097 = vld [vmem:[%s217 + $0x82] sm:$0xff]
      %v1098 = vld [vmem:[%s217 + $0x92] sm:$0xff]
      %v1099 = vld [vmem:[%s217 + $0x9a] sm:$0xff]
      %v1100 = vld [vmem:[%s217 + $0xaa] sm:$0xff]
      %v1101 = vld [vmem:[%s217 + $0xb2] sm:$0xff]
      %v1102 = vld [vmem:[%s217 + $0xc2] sm:$0xff]
      %v1103 = vld [vmem:[%s217 + $0xca] sm:$0xff]
      %v1104 = vld [vmem:[%s217 + $0xda] sm:$0xff]
      %v1105 = vld [vmem:[%s217 + $0xe2] sm:$0xff]
      %v1106 = vld [vmem:[%s217 + $0xf2] sm:$0xff]
      %v1107 = vld [vmem:[%s217 + $0xfa] sm:$0xff]
      %v1108 = vld [vmem:[%s217 + $0x10a] sm:$0xff]
      %v1109 = vld [vmem:[%s217 + $0x112] sm:$0xff]
      %v1110 = vld [vmem:[%s217 + $0x122] sm:$0xff]
      %v1111 = vld [vmem:[%s217 + $0x12a] sm:$0xff]
      %v1112 = vld [vmem:[%s217 + $0x13a] sm:$0xff]
      %v1113 = vld [vmem:[%s217 + $0x142] sm:$0xff]
      %v1114 = vld [vmem:[%s217 + $0x152] sm:$0xff]
      %v1115 = vld [vmem:[%s217 + $0x15a] sm:$0xff]
      %v1116 = vld [vmem:[%s217 + $0x16a] sm:$0xff]
      %v1117 = vld [vmem:[%s217 + $0x172] sm:$0xff]
      %1150 = vrot.lane.b32.xlu0 %v1086, 20
      %v1151 = vpop.permute.xlu0 %1150
      %1152 = vrot.lane.b32.xlu0 %v1087, 20
      %v1153 = vpop.permute.xlu0 %1152
      %1154 = vrot.lane.b32.xlu0 %v1088, 20
      %v1155 = vpop.permute.xlu0 %1154
      %1156 = vrot.lane.b32.xlu0 %v1089, 20
      %v1157 = vpop.permute.xlu0 %1156
      %1158 = vrot.lane.b32.xlu0 %v1090, 20
      %v1159 = vpop.permute.xlu0 %1158
      %1160 = vrot.lane.b32.xlu0 %v1091, 20
      %v1161 = vpop.permute.xlu0 %1160
      %1162 = vrot.lane.b32.xlu0 %v1092, 20
      %v1163 = vpop.permute.xlu0 %1162
      %1164 = vrot.lane.b32.xlu0 %v1093, 20
      %v1165 = vpop.permute.xlu0 %1164
      %1166 = vrot.lane.b32.xlu0 %v1094, 20
      %v1167 = vpop.permute.xlu0 %1166
      %1168 = vrot.lane.b32.xlu0 %v1095, 20
      %v1169 = vpop.permute.xlu0 %1168
      %1170 = vrot.lane.b32.xlu0 %v1096, 20
      %v1171 = vpop.permute.xlu0 %1170
      %1172 = vrot.lane.b32.xlu0 %v1097, 20
      %v1173 = vpop.permute.xlu0 %1172
      %1174 = vrot.lane.b32.xlu0 %v1098, 20
      %v1175 = vpop.permute.xlu0 %1174
      %1176 = vrot.lane.b32.xlu0 %v1099, 20
      %v1177 = vpop.permute.xlu0 %1176
      %1178 = vrot.lane.b32.xlu0 %v1100, 20
      %v1179 = vpop.permute.xlu0 %1178
      %1180 = vrot.lane.b32.xlu0 %v1101, 20
      %v1181 = vpop.permute.xlu0 %1180
      %1182 = vrot.lane.b32.xlu0 %v1102, 20
      %v1183 = vpop.permute.xlu0 %1182
      %1184 = vrot.lane.b32.xlu0 %v1103, 20
      %v1185 = vpop.permute.xlu0 %1184
      %1186 = vrot.lane.b32.xlu0 %v1104, 20
      %v1187 = vpop.permute.xlu0 %1186
      %1188 = vrot.lane.b32.xlu0 %v1105, 20
      %v1189 = vpop.permute.xlu0 %1188
      %1190 = vrot.lane.b32.xlu0 %v1106, 20
      %v1191 = vpop.permute.xlu0 %1190
      %1192 = vrot.lane.b32.xlu0 %v1107, 20
      %v1193 = vpop.permute.xlu0 %1192
      %1194 = vrot.lane.b32.xlu0 %v1108, 20
      %v1195 = vpop.permute.xlu0 %1194
      %1196 = vrot.lane.b32.xlu0 %v1109, 20
      %v1197 = vpop.permute.xlu0 %1196
      %1198 = vrot.lane.b32.xlu0 %v1110, 20
      %v1199 = vpop.permute.xlu0 %1198
      %1200 = vrot.lane.b32.xlu0 %v1111, 20
      %v1201 = vpop.permute.xlu0 %1200
      %1202 = vrot.lane.b32.xlu0 %v1112, 20
      %v1203 = vpop.permute.xlu0 %1202
      %1204 = vrot.lane.b32.xlu0 %v1113, 20
      %v1205 = vpop.permute.xlu0 %1204
      %1206 = vrot.lane.b32.xlu0 %v1114, 20
      %v1207 = vpop.permute.xlu0 %1206
      %1208 = vrot.lane.b32.xlu0 %v1115, 20
      %v1209 = vpop.permute.xlu0 %1208
      %1210 = vrot.lane.b32.xlu0 %v1116, 20
      %v1211 = vpop.permute.xlu0 %1210
      %1212 = vrot.lane.b32.xlu0 %v1117, 20
      %v1213 = vpop.permute.xlu0 %1212
      %vm1246 = vcmask 195744
      %1247 = vst.msk [vmem:[#allocation3] sm:$0xff] %vm1246, %v1151
      %1248 = vst.msk [vmem:[#allocation3 + $0x8] sm:$0xff] %vm1246, %v1153
      %1249 = vst.msk [vmem:[#allocation3 + $0x10] sm:$0xff] %vm1246, %v1155
      %1250 = vst.msk [vmem:[#allocation3 + $0x18] sm:$0xff] %vm1246, %v1157
      %1251 = vst.msk [vmem:[#allocation3 + $0x20] sm:$0xff] %vm1246, %v1159
      %1252 = vst.msk [vmem:[#allocation3 + $0x28] sm:$0xff] %vm1246, %v1161
      %1253 = vst.msk [vmem:[#allocation3 + $0x30] sm:$0xff] %vm1246, %v1163
      %1254 = vst.msk [vmem:[#allocation3 + $0x38] sm:$0xff] %vm1246, %v1165
      %1255 = vst.msk [vmem:[#allocation3 + $0x40] sm:$0xff] %vm1246, %v1167
      %1256 = vst.msk [vmem:[#allocation3 + $0x48] sm:$0xff] %vm1246, %v1169
      %1257 = vst.msk [vmem:[#allocation3 + $0x50] sm:$0xff] %vm1246, %v1171
      %1258 = vst.msk [vmem:[#allocation3 + $0x58] sm:$0xff] %vm1246, %v1173
      %1259 = vst.msk [vmem:[#allocation3 + $0x60] sm:$0xff] %vm1246, %v1175
      %1260 = vst.msk [vmem:[#allocation3 + $0x68] sm:$0xff] %vm1246, %v1177
      %1261 = vst.msk [vmem:[#allocation3 + $0x70] sm:$0xff] %vm1246, %v1179
      %1262 = vst.msk [vmem:[#allocation3 + $0x78] sm:$0xff] %vm1246, %v1181
      %1263 = vst.msk [vmem:[#allocation3 + $0x80] sm:$0xff] %vm1246, %v1183
      %1264 = vst.msk [vmem:[#allocation3 + $0x88] sm:$0xff] %vm1246, %v1185
      %1265 = vst.msk [vmem:[#allocation3 + $0x90] sm:$0xff] %vm1246, %v1187
      %1266 = vst.msk [vmem:[#allocation3 + $0x98] sm:$0xff] %vm1246, %v1189
      %1267 = vst.msk [vmem:[#allocation3 + $0xa0] sm:$0xff] %vm1246, %v1191
      %1268 = vst.msk [vmem:[#allocation3 + $0xa8] sm:$0xff] %vm1246, %v1193
      %1269 = vst.msk [vmem:[#allocation3 + $0xb0] sm:$0xff] %vm1246, %v1195
      %1270 = vst.msk [vmem:[#allocation3 + $0xb8] sm:$0xff] %vm1246, %v1197
      %1271 = vst.msk [vmem:[#allocation3 + $0xc0] sm:$0xff] %vm1246, %v1199
      %1272 = vst.msk [vmem:[#allocation3 + $0xc8] sm:$0xff] %vm1246, %v1201
      %1273 = vst.msk [vmem:[#allocation3 + $0xd0] sm:$0xff] %vm1246, %v1203
      %1274 = vst.msk [vmem:[#allocation3 + $0xd8] sm:$0xff] %vm1246, %v1205
      %1275 = vst.msk [vmem:[#allocation3 + $0xe0] sm:$0xff] %vm1246, %v1207
      %1276 = vst.msk [vmem:[#allocation3 + $0xe8] sm:$0xff] %vm1246, %v1209
      %1277 = vst.msk [vmem:[#allocation3 + $0xf0] sm:$0xff] %vm1246, %v1211
      %1278 = vst.msk [vmem:[#allocation3 + $0xf8] sm:$0xff] %vm1246, %v1213
      %s1279 = scalar_lea.vmem [#allocation2], 48
      %v1280 = vld [vmem:[%s1279] sm:$0xff]
      %v1281 = vld [vmem:[%s1279 + $0x8] sm:$0xff]
      %v1282 = vld [vmem:[%s1279 + $0x18] sm:$0xff]
      %v1283 = vld [vmem:[%s1279 + $0x20] sm:$0xff]
      %v1284 = vld [vmem:[%s1279 + $0x30] sm:$0xff]
      %v1285 = vld [vmem:[%s1279 + $0x38] sm:$0xff]
      %v1286 = vld [vmem:[%s1279 + $0x48] sm:$0xff]
      %v1287 = vld [vmem:[%s1279 + $0x50] sm:$0xff]
      %v1288 = vld [vmem:[%s1279 + $0x60] sm:$0xff]
      %v1289 = vld [vmem:[%s1279 + $0x68] sm:$0xff]
      %v1290 = vld [vmem:[%s1279 + $0x78] sm:$0xff]
      %v1291 = vld [vmem:[%s1279 + $0x80] sm:$0xff]
      %v1292 = vld [vmem:[%s1279 + $0x90] sm:$0xff]
      %v1293 = vld [vmem:[%s1279 + $0x98] sm:$0xff]
      %v1294 = vld [vmem:[%s1279 + $0xa8] sm:$0xff]
      %v1295 = vld [vmem:[%s1279 + $0xb0] sm:$0xff]
      %v1296 = vld [vmem:[%s1279 + $0xc0] sm:$0xff]
      %v1297 = vld [vmem:[%s1279 + $0xc8] sm:$0xff]
      %v1298 = vld [vmem:[%s1279 + $0xd8] sm:$0xff]
      %v1299 = vld [vmem:[%s1279 + $0xe0] sm:$0xff]
      %v1300 = vld [vmem:[%s1279 + $0xf0] sm:$0xff]
      %v1301 = vld [vmem:[%s1279 + $0xf8] sm:$0xff]
      %v1302 = vld [vmem:[%s1279 + $0x108] sm:$0xff]
      %v1303 = vld [vmem:[%s1279 + $0x110] sm:$0xff]
      %v1304 = vld [vmem:[%s1279 + $0x120] sm:$0xff]
      %v1305 = vld [vmem:[%s1279 + $0x128] sm:$0xff]
      %v1306 = vld [vmem:[%s1279 + $0x138] sm:$0xff]
      %v1307 = vld [vmem:[%s1279 + $0x140] sm:$0xff]
      %v1308 = vld [vmem:[%s1279 + $0x150] sm:$0xff]
      %v1309 = vld [vmem:[%s1279 + $0x158] sm:$0xff]
      %v1310 = vld [vmem:[%s1279 + $0x168] sm:$0xff]
      %v1311 = vld [vmem:[%s1279 + $0x170] sm:$0xff]
      %1344 = vrot.lane.b32.xlu0 %v1280, 24
      %v1345 = vpop.permute.xlu0 %1344
      %1346 = vrot.lane.b32.xlu0 %v1281, 24
      %v1347 = vpop.permute.xlu0 %1346
      %1348 = vrot.lane.b32.xlu0 %v1282, 24
      %v1349 = vpop.permute.xlu0 %1348
      %1350 = vrot.lane.b32.xlu0 %v1283, 24
      %v1351 = vpop.permute.xlu0 %1350
      %1352 = vrot.lane.b32.xlu0 %v1284, 24
      %v1353 = vpop.permute.xlu0 %1352
      %1354 = vrot.lane.b32.xlu0 %v1285, 24
      %v1355 = vpop.permute.xlu0 %1354
      %1356 = vrot.lane.b32.xlu0 %v1286, 24
      %v1357 = vpop.permute.xlu0 %1356
      %1358 = vrot.lane.b32.xlu0 %v1287, 24
      %v1359 = vpop.permute.xlu0 %1358
      %1360 = vrot.lane.b32.xlu0 %v1288, 24
      %v1361 = vpop.permute.xlu0 %1360
      %1362 = vrot.lane.b32.xlu0 %v1289, 24
      %v1363 = vpop.permute.xlu0 %1362
      %1364 = vrot.lane.b32.xlu0 %v1290, 24
      %v1365 = vpop.permute.xlu0 %1364
      %1366 = vrot.lane.b32.xlu0 %v1291, 24
      %v1367 = vpop.permute.xlu0 %1366
      %1368 = vrot.lane.b32.xlu0 %v1292, 24
      %v1369 = vpop.permute.xlu0 %1368
      %1370 = vrot.lane.b32.xlu0 %v1293, 24
      %v1371 = vpop.permute.xlu0 %1370
      %1372 = vrot.lane.b32.xlu0 %v1294, 24
      %v1373 = vpop.permute.xlu0 %1372
      %1374 = vrot.lane.b32.xlu0 %v1295, 24
      %v1375 = vpop.permute.xlu0 %1374
      %1376 = vrot.lane.b32.xlu0 %v1296, 24
      %v1377 = vpop.permute.xlu0 %1376
      %1378 = vrot.lane.b32.xlu0 %v1297, 24
      %v1379 = vpop.permute.xlu0 %1378
      %1380 = vrot.lane.b32.xlu0 %v1298, 24
      %v1381 = vpop.permute.xlu0 %1380
      %1382 = vrot.lane.b32.xlu0 %v1299, 24
      %v1383 = vpop.permute.xlu0 %1382
      %1384 = vrot.lane.b32.xlu0 %v1300, 24
      %v1385 = vpop.permute.xlu0 %1384
      %1386 = vrot.lane.b32.xlu0 %v1301, 24
      %v1387 = vpop.permute.xlu0 %1386
      %1388 = vrot.lane.b32.xlu0 %v1302, 24
      %v1389 = vpop.permute.xlu0 %1388
      %1390 = vrot.lane.b32.xlu0 %v1303, 24
      %v1391 = vpop.permute.xlu0 %1390
      %1392 = vrot.lane.b32.xlu0 %v1304, 24
      %v1393 = vpop.permute.xlu0 %1392
      %1394 = vrot.lane.b32.xlu0 %v1305, 24
      %v1395 = vpop.permute.xlu0 %1394
      %1396 = vrot.lane.b32.xlu0 %v1306, 24
      %v1397 = vpop.permute.xlu0 %1396
      %1398 = vrot.lane.b32.xlu0 %v1307, 24
      %v1399 = vpop.permute.xlu0 %1398
      %1400 = vrot.lane.b32.xlu0 %v1308, 24
      %v1401 = vpop.permute.xlu0 %1400
      %1402 = vrot.lane.b32.xlu0 %v1309, 24
      %v1403 = vpop.permute.xlu0 %1402
      %1404 = vrot.lane.b32.xlu0 %v1310, 24
      %v1405 = vpop.permute.xlu0 %1404
      %1406 = vrot.lane.b32.xlu0 %v1311, 24
      %v1407 = vpop.permute.xlu0 %1406
      %vm1440 = vcmask 228544
      %1441 = vst.msk [vmem:[#allocation3] sm:$0xff] %vm1440, %v1345
      %1442 = vst.msk [vmem:[#allocation3 + $0x8] sm:$0xff] %vm1440, %v1347
      %1443 = vst.msk [vmem:[#allocation3 + $0x10] sm:$0xff] %vm1440, %v1349
      %1444 = vst.msk [vmem:[#allocation3 + $0x18] sm:$0xff] %vm1440, %v1351
      %1445 = vst.msk [vmem:[#allocation3 + $0x20] sm:$0xff] %vm1440, %v1353
      %1446 = vst.msk [vmem:[#allocation3 + $0x28] sm:$0xff] %vm1440, %v1355
      %1447 = vst.msk [vmem:[#allocation3 + $0x30] sm:$0xff] %vm1440, %v1357
      %1448 = vst.msk [vmem:[#allocation3 + $0x38] sm:$0xff] %vm1440, %v1359
      %1449 = vst.msk [vmem:[#allocation3 + $0x40] sm:$0xff] %vm1440, %v1361
      %1450 = vst.msk [vmem:[#allocation3 + $0x48] sm:$0xff] %vm1440, %v1363
      %1451 = vst.msk [vmem:[#allocation3 + $0x50] sm:$0xff] %vm1440, %v1365
      %1452 = vst.msk [vmem:[#allocation3 + $0x58] sm:$0xff] %vm1440, %v1367
      %1453 = vst.msk [vmem:[#allocation3 + $0x60] sm:$0xff] %vm1440, %v1369
      %1454 = vst.msk [vmem:[#allocation3 + $0x68] sm:$0xff] %vm1440, %v1371
      %1455 = vst.msk [vmem:[#allocation3 + $0x70] sm:$0xff] %vm1440, %v1373
      %1456 = vst.msk [vmem:[#allocation3 + $0x78] sm:$0xff] %vm1440, %v1375
      %1457 = vst.msk [vmem:[#allocation3 + $0x80] sm:$0xff] %vm1440, %v1377
      %1458 = vst.msk [vmem:[#allocation3 + $0x88] sm:$0xff] %vm1440, %v1379
      %1459 = vst.msk [vmem:[#allocation3 + $0x90] sm:$0xff] %vm1440, %v1381
      %1460 = vst.msk [vmem:[#allocation3 + $0x98] sm:$0xff] %vm1440, %v1383
      %1461 = vst.msk [vmem:[#allocation3 + $0xa0] sm:$0xff] %vm1440, %v1385
      %1462 = vst.msk [vmem:[#allocation3 + $0xa8] sm:$0xff] %vm1440, %v1387
      %1463 = vst.msk [vmem:[#allocation3 + $0xb0] sm:$0xff] %vm1440, %v1389
      %1464 = vst.msk [vmem:[#allocation3 + $0xb8] sm:$0xff] %vm1440, %v1391
      %1465 = vst.msk [vmem:[#allocation3 + $0xc0] sm:$0xff] %vm1440, %v1393
      %1466 = vst.msk [vmem:[#allocation3 + $0xc8] sm:$0xff] %vm1440, %v1395
      %1467 = vst.msk [vmem:[#allocation3 + $0xd0] sm:$0xff] %vm1440, %v1397
      %1468 = vst.msk [vmem:[#allocation3 + $0xd8] sm:$0xff] %vm1440, %v1399
      %1469 = vst.msk [vmem:[#allocation3 + $0xe0] sm:$0xff] %vm1440, %v1401
      %1470 = vst.msk [vmem:[#allocation3 + $0xe8] sm:$0xff] %vm1440, %v1403
      %1471 = vst.msk [vmem:[#allocation3 + $0xf0] sm:$0xff] %vm1440, %v1405
      %1472 = vst.msk [vmem:[#allocation3 + $0xf8] sm:$0xff] %vm1440, %v1407
      %v1473 = vld [vmem:[%s1279 + $0x1] sm:$0xff]
      %v1474 = vld [vmem:[%s1279 + $0x9] sm:$0xff]
      %v1475 = vld [vmem:[%s1279 + $0x19] sm:$0xff]
      %v1476 = vld [vmem:[%s1279 + $0x21] sm:$0xff]
      %v1477 = vld [vmem:[%s1279 + $0x31] sm:$0xff]
      %v1478 = vld [vmem:[%s1279 + $0x39] sm:$0xff]
      %v1479 = vld [vmem:[%s1279 + $0x49] sm:$0xff]
      %v1480 = vld [vmem:[%s1279 + $0x51] sm:$0xff]
      %v1481 = vld [vmem:[%s1279 + $0x61] sm:$0xff]
      %v1482 = vld [vmem:[%s1279 + $0x69] sm:$0xff]
      %v1483 = vld [vmem:[%s1279 + $0x79] sm:$0xff]
      %v1484 = vld [vmem:[%s1279 + $0x81] sm:$0xff]
      %v1485 = vld [vmem:[%s1279 + $0x91] sm:$0xff]
      %v1486 = vld [vmem:[%s1279 + $0x99] sm:$0xff]
      %v1487 = vld [vmem:[%s1279 + $0xa9] sm:$0xff]
      %v1488 = vld [vmem:[%s1279 + $0xb1] sm:$0xff]
      %v1489 = vld [vmem:[%s1279 + $0xc1] sm:$0xff]
      %v1490 = vld [vmem:[%s1279 + $0xc9] sm:$0xff]
      %v1491 = vld [vmem:[%s1279 + $0xd9] sm:$0xff]
      %v1492 = vld [vmem:[%s1279 + $0xe1] sm:$0xff]
      %v1493 = vld [vmem:[%s1279 + $0xf1] sm:$0xff]
      %v1494 = vld [vmem:[%s1279 + $0xf9] sm:$0xff]
      %v1495 = vld [vmem:[%s1279 + $0x109] sm:$0xff]
      %v1496 = vld [vmem:[%s1279 + $0x111] sm:$0xff]
      %v1497 = vld [vmem:[%s1279 + $0x121] sm:$0xff]
      %v1498 = vld [vmem:[%s1279 + $0x129] sm:$0xff]
      %v1499 = vld [vmem:[%s1279 + $0x139] sm:$0xff]
      %v1500 = vld [vmem:[%s1279 + $0x141] sm:$0xff]
      %v1501 = vld [vmem:[%s1279 + $0x151] sm:$0xff]
      %v1502 = vld [vmem:[%s1279 + $0x159] sm:$0xff]
      %v1503 = vld [vmem:[%s1279 + $0x169] sm:$0xff]
      %v1504 = vld [vmem:[%s1279 + $0x171] sm:$0xff]
      %1537 = vrot.lane.b32.xlu0 %v1473, 28
      %v1538 = vpop.permute.xlu0 %1537
      %1539 = vrot.lane.b32.xlu0 %v1474, 28
      %v1540 = vpop.permute.xlu0 %1539
      %1541 = vrot.lane.b32.xlu0 %v1475, 28
      %v1542 = vpop.permute.xlu0 %1541
      %1543 = vrot.lane.b32.xlu0 %v1476, 28
      %v1544 = vpop.permute.xlu0 %1543
      %1545 = vrot.lane.b32.xlu0 %v1477, 28
      %v1546 = vpop.permute.xlu0 %1545
      %1547 = vrot.lane.b32.xlu0 %v1478, 28
      %v1548 = vpop.permute.xlu0 %1547
      %1549 = vrot.lane.b32.xlu0 %v1479, 28
      %v1550 = vpop.permute.xlu0 %1549
      %1551 = vrot.lane.b32.xlu0 %v1480, 28
      %v1552 = vpop.permute.xlu0 %1551
      %1553 = vrot.lane.b32.xlu0 %v1481, 28
      %v1554 = vpop.permute.xlu0 %1553
      %1555 = vrot.lane.b32.xlu0 %v1482, 28
      %v1556 = vpop.permute.xlu0 %1555
      %1557 = vrot.lane.b32.xlu0 %v1483, 28
      %v1558 = vpop.permute.xlu0 %1557
      %1559 = vrot.lane.b32.xlu0 %v1484, 28
      %v1560 = vpop.permute.xlu0 %1559
      %1561 = vrot.lane.b32.xlu0 %v1485, 28
      %v1562 = vpop.permute.xlu0 %1561
      %1563 = vrot.lane.b32.xlu0 %v1486, 28
      %v1564 = vpop.permute.xlu0 %1563
      %1565 = vrot.lane.b32.xlu0 %v1487, 28
      %v1566 = vpop.permute.xlu0 %1565
      %1567 = vrot.lane.b32.xlu0 %v1488, 28
      %v1568 = vpop.permute.xlu0 %1567
      %1569 = vrot.lane.b32.xlu0 %v1489, 28
      %v1570 = vpop.permute.xlu0 %1569
      %1571 = vrot.lane.b32.xlu0 %v1490, 28
      %v1572 = vpop.permute.xlu0 %1571
      %1573 = vrot.lane.b32.xlu0 %v1491, 28
      %v1574 = vpop.permute.xlu0 %1573
      %1575 = vrot.lane.b32.xlu0 %v1492, 28
      %v1576 = vpop.permute.xlu0 %1575
      %1577 = vrot.lane.b32.xlu0 %v1493, 28
      %v1578 = vpop.permute.xlu0 %1577
      %1579 = vrot.lane.b32.xlu0 %v1494, 28
      %v1580 = vpop.permute.xlu0 %1579
      %1581 = vrot.lane.b32.xlu0 %v1495, 28
      %v1582 = vpop.permute.xlu0 %1581
      %1583 = vrot.lane.b32.xlu0 %v1496, 28
      %v1584 = vpop.permute.xlu0 %1583
      %1585 = vrot.lane.b32.xlu0 %v1497, 28
      %v1586 = vpop.permute.xlu0 %1585
      %1587 = vrot.lane.b32.xlu0 %v1498, 28
      %v1588 = vpop.permute.xlu0 %1587
      %1589 = vrot.lane.b32.xlu0 %v1499, 28
      %v1590 = vpop.permute.xlu0 %1589
      %1591 = vrot.lane.b32.xlu0 %v1500, 28
      %v1592 = vpop.permute.xlu0 %1591
      %1593 = vrot.lane.b32.xlu0 %v1501, 28
      %v1594 = vpop.permute.xlu0 %1593
      %1595 = vrot.lane.b32.xlu0 %v1502, 28
      %v1596 = vpop.permute.xlu0 %1595
      %1597 = vrot.lane.b32.xlu0 %v1503, 28
      %v1598 = vpop.permute.xlu0 %1597
      %1599 = vrot.lane.b32.xlu0 %v1504, 28
      %v1600 = vpop.permute.xlu0 %1599
      %vm1633 = vcmask 261344
      %1634 = vst.msk [vmem:[#allocation3] sm:$0xff] %vm1633, %v1538
      %1635 = vst.msk [vmem:[#allocation3 + $0x8] sm:$0xff] %vm1633, %v1540
      %1636 = vst.msk [vmem:[#allocation3 + $0x10] sm:$0xff] %vm1633, %v1542
      %1637 = vst.msk [vmem:[#allocation3 + $0x18] sm:$0xff] %vm1633, %v1544
      %1638 = vst.msk [vmem:[#allocation3 + $0x20] sm:$0xff] %vm1633, %v1546
      %1639 = vst.msk [vmem:[#allocation3 + $0x28] sm:$0xff] %vm1633, %v1548
      %1640 = vst.msk [vmem:[#allocation3 + $0x30] sm:$0xff] %vm1633, %v1550
      %1641 = vst.msk [vmem:[#allocation3 + $0x38] sm:$0xff] %vm1633, %v1552
      %1642 = vst.msk [vmem:[#allocation3 + $0x40] sm:$0xff] %vm1633, %v1554
      %1643 = vst.msk [vmem:[#allocation3 + $0x48] sm:$0xff] %vm1633, %v1556
      %1644 = vst.msk [vmem:[#allocation3 + $0x50] sm:$0xff] %vm1633, %v1558
      %1645 = vst.msk [vmem:[#allocation3 + $0x58] sm:$0xff] %vm1633, %v1560
      %1646 = vst.msk [vmem:[#allocation3 + $0x60] sm:$0xff] %vm1633, %v1562
      %1647 = vst.msk [vmem:[#allocation3 + $0x68] sm:$0xff] %vm1633, %v1564
      %1648 = vst.msk [vmem:[#allocation3 + $0x70] sm:$0xff] %vm1633, %v1566
      %1649 = vst.msk [vmem:[#allocation3 + $0x78] sm:$0xff] %vm1633, %v1568
      %1650 = vst.msk [vmem:[#allocation3 + $0x80] sm:$0xff] %vm1633, %v1570
      %1651 = vst.msk [vmem:[#allocation3 + $0x88] sm:$0xff] %vm1633, %v1572
      %1652 = vst.msk [vmem:[#allocation3 + $0x90] sm:$0xff] %vm1633, %v1574
      %1653 = vst.msk [vmem:[#allocation3 + $0x98] sm:$0xff] %vm1633, %v1576
      %1654 = vst.msk [vmem:[#allocation3 + $0xa0] sm:$0xff] %vm1633, %v1578
      %1655 = vst.msk [vmem:[#allocation3 + $0xa8] sm:$0xff] %vm1633, %v1580
      %1656 = vst.msk [vmem:[#allocation3 + $0xb0] sm:$0xff] %vm1633, %v1582
      %1657 = vst.msk [vmem:[#allocation3 + $0xb8] sm:$0xff] %vm1633, %v1584
      %1658 = vst.msk [vmem:[#allocation3 + $0xc0] sm:$0xff] %vm1633, %v1586
      %1659 = vst.msk [vmem:[#allocation3 + $0xc8] sm:$0xff] %vm1633, %v1588
      %1660 = vst.msk [vmem:[#allocation3 + $0xd0] sm:$0xff] %vm1633, %v1590
      %1661 = vst.msk [vmem:[#allocation3 + $0xd8] sm:$0xff] %vm1633, %v1592
      %1662 = vst.msk [vmem:[#allocation3 + $0xe0] sm:$0xff] %vm1633, %v1594
      %1663 = vst.msk [vmem:[#allocation3 + $0xe8] sm:$0xff] %vm1633, %v1596
      %1664 = vst.msk [vmem:[#allocation3 + $0xf0] sm:$0xff] %vm1633, %v1598
      %1665 = vst.msk [vmem:[#allocation3 + $0xf8] sm:$0xff] %vm1633, %v1600
      %v1666 = vld [vmem:[%s1279 + $0x2] sm:$0xff]
      %v1667 = vld [vmem:[%s1279 + $0xa] sm:$0xff]
      %v1668 = vld [vmem:[%s1279 + $0x1a] sm:$0xff]
      %v1669 = vld [vmem:[%s1279 + $0x22] sm:$0xff]
      %v1670 = vld [vmem:[%s1279 + $0x32] sm:$0xff]
      %v1671 = vld [vmem:[%s1279 + $0x3a] sm:$0xff]
      %v1672 = vld [vmem:[%s1279 + $0x4a] sm:$0xff]
      %v1673 = vld [vmem:[%s1279 + $0x52] sm:$0xff]
      %v1674 = vld [vmem:[%s1279 + $0x62] sm:$0xff]
      %v1675 = vld [vmem:[%s1279 + $0x6a] sm:$0xff]
      %v1676 = vld [vmem:[%s1279 + $0x7a] sm:$0xff]
      %v1677 = vld [vmem:[%s1279 + $0x82] sm:$0xff]
      %v1678 = vld [vmem:[%s1279 + $0x92] sm:$0xff]
      %v1679 = vld [vmem:[%s1279 + $0x9a] sm:$0xff]
      %v1680 = vld [vmem:[%s1279 + $0xaa] sm:$0xff]
      %v1681 = vld [vmem:[%s1279 + $0xb2] sm:$0xff]
      %v1682 = vld [vmem:[%s1279 + $0xc2] sm:$0xff]
      %v1683 = vld [vmem:[%s1279 + $0xca] sm:$0xff]
      %v1684 = vld [vmem:[%s1279 + $0xda] sm:$0xff]
      %v1685 = vld [vmem:[%s1279 + $0xe2] sm:$0xff]
      %v1686 = vld [vmem:[%s1279 + $0xf2] sm:$0xff]
      %v1687 = vld [vmem:[%s1279 + $0xfa] sm:$0xff]
      %v1688 = vld [vmem:[%s1279 + $0x10a] sm:$0xff]
      %v1689 = vld [vmem:[%s1279 + $0x112] sm:$0xff]
      %v1690 = vld [vmem:[%s1279 + $0x122] sm:$0xff]
      %v1691 = vld [vmem:[%s1279 + $0x12a] sm:$0xff]
      %v1692 = vld [vmem:[%s1279 + $0x13a] sm:$0xff]
      %v1693 = vld [vmem:[%s1279 + $0x142] sm:$0xff]
      %v1694 = vld [vmem:[%s1279 + $0x152] sm:$0xff]
      %v1695 = vld [vmem:[%s1279 + $0x15a] sm:$0xff]
      %v1696 = vld [vmem:[%s1279 + $0x16a] sm:$0xff]
      %v1697 = vld [vmem:[%s1279 + $0x172] sm:$0xff]
      %1730 = vrot.lane.b32.xlu0 %v1666, 32
      %v1731 = vpop.permute.xlu0 %1730
      %1732 = vrot.lane.b32.xlu0 %v1667, 32
      %v1733 = vpop.permute.xlu0 %1732
      %1734 = vrot.lane.b32.xlu0 %v1668, 32
      %v1735 = vpop.permute.xlu0 %1734
      %1736 = vrot.lane.b32.xlu0 %v1669, 32
      %v1737 = vpop.permute.xlu0 %1736
      %1738 = vrot.lane.b32.xlu0 %v1670, 32
      %v1739 = vpop.permute.xlu0 %1738
      %1740 = vrot.lane.b32.xlu0 %v1671, 32
      %v1741 = vpop.permute.xlu0 %1740
      %1742 = vrot.lane.b32.xlu0 %v1672, 32
      %v1743 = vpop.permute.xlu0 %1742
      %1744 = vrot.lane.b32.xlu0 %v1673, 32
      %v1745 = vpop.permute.xlu0 %1744
      %1746 = vrot.lane.b32.xlu0 %v1674, 32
      %v1747 = vpop.permute.xlu0 %1746
      %1748 = vrot.lane.b32.xlu0 %v1675, 32
      %v1749 = vpop.permute.xlu0 %1748
      %1750 = vrot.lane.b32.xlu0 %v1676, 32
      %v1751 = vpop.permute.xlu0 %1750
      %1752 = vrot.lane.b32.xlu0 %v1677, 32
      %v1753 = vpop.permute.xlu0 %1752
      %1754 = vrot.lane.b32.xlu0 %v1678, 32
      %v1755 = vpop.permute.xlu0 %1754
      %1756 = vrot.lane.b32.xlu0 %v1679, 32
      %v1757 = vpop.permute.xlu0 %1756
      %1758 = vrot.lane.b32.xlu0 %v1680, 32
      %v1759 = vpop.permute.xlu0 %1758
      %1760 = vrot.lane.b32.xlu0 %v1681, 32
      %v1761 = vpop.permute.xlu0 %1760
      %1762 = vrot.lane.b32.xlu0 %v1682, 32
      %v1763 = vpop.permute.xlu0 %1762
      %1764 = vrot.lane.b32.xlu0 %v1683, 32
      %v1765 = vpop.permute.xlu0 %1764
      %1766 = vrot.lane.b32.xlu0 %v1684, 32
      %v1767 = vpop.permute.xlu0 %1766
      %1768 = vrot.lane.b32.xlu0 %v1685, 32
      %v1769 = vpop.permute.xlu0 %1768
      %1770 = vrot.lane.b32.xlu0 %v1686, 32
      %v1771 = vpop.permute.xlu0 %1770
      %1772 = vrot.lane.b32.xlu0 %v1687, 32
      %v1773 = vpop.permute.xlu0 %1772
      %1774 = vrot.lane.b32.xlu0 %v1688, 32
      %v1775 = vpop.permute.xlu0 %1774
      %1776 = vrot.lane.b32.xlu0 %v1689, 32
      %v1777 = vpop.permute.xlu0 %1776
      %1778 = vrot.lane.b32.xlu0 %v1690, 32
      %v1779 = vpop.permute.xlu0 %1778
      %1780 = vrot.lane.b32.xlu0 %v1691, 32
      %v1781 = vpop.permute.xlu0 %1780
      %1782 = vrot.lane.b32.xlu0 %v1692, 32
      %v1783 = vpop.permute.xlu0 %1782
      %1784 = vrot.lane.b32.xlu0 %v1693, 32
      %v1785 = vpop.permute.xlu0 %1784
      %1786 = vrot.lane.b32.xlu0 %v1694, 32
      %v1787 = vpop.permute.xlu0 %1786
      %1788 = vrot.lane.b32.xlu0 %v1695, 32
      %v1789 = vpop.permute.xlu0 %1788
      %1790 = vrot.lane.b32.xlu0 %v1696, 32
      %v1791 = vpop.permute.xlu0 %1790
      %1792 = vrot.lane.b32.xlu0 %v1697, 32
      %v1793 = vpop.permute.xlu0 %1792
      %vm1826 = vcmask 294144
      %1827 = vst.msk [vmem:[#allocation3] sm:$0xff] %vm1826, %v1731
      %1828 = vst.msk [vmem:[#allocation3 + $0x8] sm:$0xff] %vm1826, %v1733
      %1829 = vst.msk [vmem:[#allocation3 + $0x10] sm:$0xff] %vm1826, %v1735
      %1830 = vst.msk [vmem:[#allocation3 + $0x18] sm:$0xff] %vm1826, %v1737
      %1831 = vst.msk [vmem:[#allocation3 + $0x20] sm:$0xff] %vm1826, %v1739
      %1832 = vst.msk [vmem:[#allocation3 + $0x28] sm:$0xff] %vm1826, %v1741
      %1833 = vst.msk [vmem:[#allocation3 + $0x30] sm:$0xff] %vm1826, %v1743
      %1834 = vst.msk [vmem:[#allocation3 + $0x38] sm:$0xff] %vm1826, %v1745
      %1835 = vst.msk [vmem:[#allocation3 + $0x40] sm:$0xff] %vm1826, %v1747
      %1836 = vst.msk [vmem:[#allocation3 + $0x48] sm:$0xff] %vm1826, %v1749
      %1837 = vst.msk [vmem:[#allocation3 + $0x50] sm:$0xff] %vm1826, %v1751
      %1838 = vst.msk [vmem:[#allocation3 + $0x58] sm:$0xff] %vm1826, %v1753
      %1839 = vst.msk [vmem:[#allocation3 + $0x60] sm:$0xff] %vm1826, %v1755
      %1840 = vst.msk [vmem:[#allocation3 + $0x68] sm:$0xff] %vm1826, %v1757
      %1841 = vst.msk [vmem:[#allocation3 + $0x70] sm:$0xff] %vm1826, %v1759
      %1842 = vst.msk [vmem:[#allocation3 + $0x78] sm:$0xff] %vm1826, %v1761
      %1843 = vst.msk [vmem:[#allocation3 + $0x80] sm:$0xff] %vm1826, %v1763
      %1844 = vst.msk [vmem:[#allocation3 + $0x88] sm:$0xff] %vm1826, %v1765
      %1845 = vst.msk [vmem:[#allocation3 + $0x90] sm:$0xff] %vm1826, %v1767
      %1846 = vst.msk [vmem:[#allocation3 + $0x98] sm:$0xff] %vm1826, %v1769
      %1847 = vst.msk [vmem:[#allocation3 + $0xa0] sm:$0xff] %vm1826, %v1771
      %1848 = vst.msk [vmem:[#allocation3 + $0xa8] sm:$0xff] %vm1826, %v1773
      %1849 = vst.msk [vmem:[#allocation3 + $0xb0] sm:$0xff] %vm1826, %v1775
      %1850 = vst.msk [vmem:[#allocation3 + $0xb8] sm:$0xff] %vm1826, %v1777
      %1851 = vst.msk [vmem:[#allocation3 + $0xc0] sm:$0xff] %vm1826, %v1779
      %1852 = vst.msk [vmem:[#allocation3 + $0xc8] sm:$0xff] %vm1826, %v1781
      %1853 = vst.msk [vmem:[#allocation3 + $0xd0] sm:$0xff] %vm1826, %v1783
      %1854 = vst.msk [vmem:[#allocation3 + $0xd8] sm:$0xff] %vm1826, %v1785
      %1855 = vst.msk [vmem:[#allocation3 + $0xe0] sm:$0xff] %vm1826, %v1787
      %1856 = vst.msk [vmem:[#allocation3 + $0xe8] sm:$0xff] %vm1826, %v1789
      %1857 = vst.msk [vmem:[#allocation3 + $0xf0] sm:$0xff] %vm1826, %v1791
      %1858 = vst.msk [vmem:[#allocation3 + $0xf8] sm:$0xff] %vm1826, %v1793
      %v1859 = vld [vmem:[%s1] sm:$0xff]
      %v1860 = vld [vmem:[#allocation3] sm:$0xff]
      %v1861 = vld [vmem:[#allocation3 + $0x8] sm:$0xff]
      %v1862 = vld [vmem:[#allocation3 + $0x10] sm:$0xff]
      %v1863 = vld [vmem:[#allocation3 + $0x18] sm:$0xff]
      %v1864 = vld [vmem:[#allocation3 + $0x20] sm:$0xff]
      %v1865 = vld [vmem:[#allocation3 + $0x28] sm:$0xff]
      %v1866 = vld [vmem:[#allocation3 + $0x30] sm:$0xff]
      %v1867 = vld [vmem:[#allocation3 + $0x38] sm:$0xff]
      %v1868 = vld [vmem:[#allocation3 + $0x40] sm:$0xff]
      %v1869 = vld [vmem:[#allocation3 + $0x48] sm:$0xff]
      %v1870 = vld [vmem:[#allocation3 + $0x50] sm:$0xff]
      %v1871 = vld [vmem:[#allocation3 + $0x58] sm:$0xff]
      %v1872 = vld [vmem:[#allocation3 + $0x60] sm:$0xff]
      %v1873 = vld [vmem:[#allocation3 + $0x68] sm:$0xff]
      %v1874 = vld [vmem:[#allocation3 + $0x70] sm:$0xff]
      %v1875 = vld [vmem:[#allocation3 + $0x78] sm:$0xff]
      %v1876 = vld [vmem:[#allocation3 + $0x80] sm:$0xff]
      %v1877 = vld [vmem:[#allocation3 + $0x88] sm:$0xff]
      %v1878 = vld [vmem:[#allocation3 + $0x90] sm:$0xff]
      %v1879 = vld [vmem:[#allocation3 + $0x98] sm:$0xff]
      %v1880 = vld [vmem:[#allocation3 + $0xa0] sm:$0xff]
      %v1881 = vld [vmem:[#allocation3 + $0xa8] sm:$0xff]
      %v1882 = vld [vmem:[#allocation3 + $0xb0] sm:$0xff]
      %v1883 = vld [vmem:[#allocation3 + $0xb8] sm:$0xff]
      %v1884 = vld [vmem:[#allocation3 + $0xc0] sm:$0xff]
      %v1885 = vld [vmem:[#allocation3 + $0xc8] sm:$0xff]
      %v1886 = vld [vmem:[#allocation3 + $0xd0] sm:$0xff]
      %v1887 = vld [vmem:[#allocation3 + $0xd8] sm:$0xff]
      %v1888 = vld [vmem:[#allocation3 + $0xe0] sm:$0xff]
      %v1889 = vld [vmem:[#allocation3 + $0xe8] sm:$0xff]
      %v1890 = vld [vmem:[#allocation3 + $0xf0] sm:$0xff]
      %v1891 = vld [vmem:[#allocation3 + $0xf8] sm:$0xff]
      %vm1892 = vcmask 293888
      %v1894 = vsel %vm1892, %v1859, 0
      %v1897 = vsel %vm1892, %v1860, 0
      %v1900 = vsel %vm1892, %v1861, 0
      %v1903 = vsel %vm1892, %v1862, 0
      %v1906 = vsel %vm1892, %v1863, 0
      %v1909 = vsel %vm1892, %v1864, 0
      %v1912 = vsel %vm1892, %v1865, 0
      %v1915 = vsel %vm1892, %v1866, 0
      %v1918 = vsel %vm1892, %v1867, 0
      %v1921 = vsel %vm1892, %v1868, 0
      %v1924 = vsel %vm1892, %v1869, 0
      %v1927 = vsel %vm1892, %v1870, 0
      %v1930 = vsel %vm1892, %v1871, 0
      %v1933 = vsel %vm1892, %v1872, 0
      %v1936 = vsel %vm1892, %v1873, 0
      %v1939 = vsel %vm1892, %v1874, 0
      %v1942 = vsel %vm1892, %v1875, 0
      %v1945 = vsel %vm1892, %v1876, 0
      %v1948 = vsel %vm1892, %v1877, 0
      %v1951 = vsel %vm1892, %v1878, 0
      %v1954 = vsel %vm1892, %v1879, 0
      %v1957 = vsel %vm1892, %v1880, 0
      %v1960 = vsel %vm1892, %v1881, 0
      %v1963 = vsel %vm1892, %v1882, 0
      %v1966 = vsel %vm1892, %v1883, 0
      %v1969 = vsel %vm1892, %v1884, 0
      %v1972 = vsel %vm1892, %v1885, 0
      %v1975 = vsel %vm1892, %v1886, 0
      %v1978 = vsel %vm1892, %v1887, 0
      %v1981 = vsel %vm1892, %v1888, 0
      %v1984 = vsel %vm1892, %v1889, 0
      %v1987 = vsel %vm1892, %v1890, 0
      %v1990 = vsel %vm1892, %v1891, 0
      %1992 = vmatprep.subr.mxu0 0.0
      %1993 = vmatpush1.xpose.msra.mxu0 %v1942
      %1994 = vmatprep.subr.mxu0 0.0
      %1995 = vmatpush1.xpose.msra.mxu0 %v1939
      %1996 = vmatprep.subr.mxu0 0.0
      %1997 = vmatpush1.xpose.msra.mxu0 %v1936
      %1998 = vmatprep.subr.mxu0 0.0
      %1999 = vmatpush1.xpose.msra.mxu0 %v1933
      %2000 = vmatprep.subr.mxu0 0.0
      %2001 = vmatpush1.xpose.msra.mxu0 %v1930
      %2002 = vmatprep.subr.mxu0 0.0
      %2003 = vmatpush1.xpose.msra.mxu0 %v1927
      %2004 = vmatprep.subr.mxu0 0.0
      %2005 = vmatpush1.xpose.msra.mxu0 %v1924
      %2006 = vmatprep.subr.mxu0 0.0
      %2007 = vmatpush1.xpose.msra.mxu0 %v1921
      %2008 = vmatprep.subr.mxu0 0.0
      %2009 = vmatpush1.xpose.msra.mxu0 %v1918
      %2010 = vmatprep.subr.mxu0 0.0
      %2011 = vmatpush1.xpose.msra.mxu0 %v1915
      %2012 = vmatprep.subr.mxu0 0.0
      %2013 = vmatpush1.xpose.msra.mxu0 %v1912
      %2014 = vmatprep.subr.mxu0 0.0
      %2015 = vmatpush1.xpose.msra.mxu0 %v1909
      %2016 = vmatprep.subr.mxu0 0.0
      %2017 = vmatpush1.xpose.msra.mxu0 %v1906
      %2018 = vmatprep.subr.mxu0 0.0
      %2019 = vmatpush1.xpose.msra.mxu0 %v1903
      %2020 = vmatprep.subr.mxu0 0.0
      %2021 = vmatpush1.xpose.msra.mxu0 %v1900
      %2022 = vmatprep.subr.mxu0 0.0
      %2023 = vmatpush1.xpose.msra.mxu0 %v1897
      %2024 = vmatprep.subr.mxu0 0.0
      %2025 = vmatpush2.xpose.msra.mxu0 %v1990
      %2026 = vmatprep.subr.mxu0 0.0
      %2027 = vmatpush2.xpose.msra.mxu0 %v1987
      %2028 = vmatprep.subr.mxu0 0.0
      %2029 = vmatpush2.xpose.msra.mxu0 %v1984
      %2030 = vmatprep.subr.mxu0 0.0
      %2031 = vmatpush2.xpose.msra.mxu0 %v1981
      %2032 = vmatprep.subr.mxu0 0.0
      %2033 = vmatpush2.xpose.msra.mxu0 %v1978
      %2034 = vmatprep.subr.mxu0 0.0
      %2035 = vmatpush2.xpose.msra.mxu0 %v1975
      %2036 = vmatprep.subr.mxu0 0.0
      %2037 = vmatpush2.xpose.msra.mxu0 %v1972
      %2038 = vmatprep.subr.mxu0 0.0
      %2039 = vmatpush2.xpose.msra.mxu0 %v1969
      %2040 = vmatprep.subr.mxu0 0.0
      %2041 = vmatpush2.xpose.msra.mxu0 %v1966
      %2042 = vmatprep.subr.mxu0 0.0
      %2043 = vmatpush2.xpose.msra.mxu0 %v1963
      %2044 = vmatprep.subr.mxu0 0.0
      %2045 = vmatpush2.xpose.msra.mxu0 %v1960
      %2046 = vmatprep.subr.mxu0 0.0
      %2047 = vmatpush2.xpose.msra.mxu0 %v1957
      %2048 = vmatprep.subr.mxu0 0.0
      %2049 = vmatpush2.xpose.msra.mxu0 %v1954
      %2050 = vmatprep.subr.mxu0 0.0
      %2051 = vmatpush2.xpose.msra.mxu0 %v1951
      %2052 = vmatprep.subr.mxu0 0.0
      %2053 = vmatpush2.xpose.msra.mxu0 %v1948
      %2054 = vmatprep.subr.mxu0 0.0
      %2055 = vmatpush2.xpose.msra.mxu0 %v1945
      %2056 = vmatprep.mubr.f32.mxu0 0.0
      %2057 = vmatmul.mubr.f32.gmra.mxu0 %v1894
      %v2058 = vpop.f32.mrf.mxu0
      %v2059 = vadd.f32 0.0, %v2058
      %v2060 = vpop.f32.mrf.mxu0
      %v2061 = vadd.f32 0.0, %v2060
      %2062 = vdwg.mxu0
      %s2063 = smul.u32 %s13, 2
      %s2064 = smul.addr %s2063, 8
      %s2065 = scalar_lea.vmem %s2, %s2064
      %2066 = vst [vmem:[%s2065] sm:$0xff] %v2059
      %2067 = vst [vmem:[%s2065 + $0x8] sm:$0xff] %v2061
      %p2068 = scmp.eq.s32.totalorder %s13, 1
      // Predicated region
      $region29: #{basic_layer_forward.1} parent=27 // pred_check
        %p2069 = pneg %p2068
      $region30: #{basic_layer_forward.1} parent=27 // pred_check_branch
        %2071 = sbr.rel (%p2069) target = $region32
      $region31: #{basic_layer_forward.1} parent=27 // pred_region
        %v2072 = vld [vmem:[%s2] sm:$0xff]
        %v2073 = vld [vmem:[%s2 + $0x8] sm:$0xff]
        %v2074 = vadd.f32 %v2072, %v2073
        %2075 = vadd.xlane.f32.xlu0 %v2074
        %v2076 = vpop.xlane.xlu0 %2075
        %v2077 = vadd.f32 %v2076, 0.0
        %s2078 = scalar_lea.vmem %s2, 16
        %v2079 = vld [vmem:[%s2078] sm:$0xff]
        %v2080 = vld [vmem:[%s2078 + $0x8] sm:$0xff]
        %v2081 = vadd.f32 %v2079, %v2080
        %2082 = vadd.xlane.f32.xlu0 %v2081
        %v2083 = vpop.xlane.xlu0 %2082
        %v2084 = vadd.f32 %v2077, %v2083
        %v2085 = vmul.f32 %v2084, 0.001953125
        %v2086 = vsub.f32 %v2072, %v2085
        %v2087 = vsub.f32 %v2073, %v2085
        %v2088 = vmul.f32 %v2086, %v2086
        %v2089 = vmul.f32 %v2087, %v2087
        %v2090 = vadd.f32 %v2088, %v2089
        %2091 = vadd.xlane.f32.xlu0 %v2090
        %v2092 = vpop.xlane.xlu0 %2091
        %v2093 = vadd.f32 %v2092, 0.0
        %v2094 = vsub.f32 %v2079, %v2085
        %v2095 = vsub.f32 %v2080, %v2085
        %v2096 = vmul.f32 %v2094, %v2094
        %v2097 = vmul.f32 %v2095, %v2095
        %v2098 = vadd.f32 %v2096, %v2097
        %2099 = vadd.xlane.f32.xlu0 %v2098
        %v2100 = vpop.xlane.xlu0 %2099
        %v2101 = vadd.f32 %v2093, %v2100
        %v2102 = vmul.f32 %v2101, 0.001953125
        %v2103 = vadd.f32 %v2102, 1e-05
        %v2104 = vrsqrt.pop %v2103
        %v2105 = vmul.f32 %v2086, %v2104
        %v2106 = vmul.f32 %v2087, %v2104
        %v2107 = vmax.f32 %v2105, 0.0
        %v2108 = vmax.f32 %v2106, 0.0
        %2109 = vst [vmem:[%s2] sm:$0xff] %v2107
        %2110 = vst [vmem:[%s2 + $0x8] sm:$0xff] %v2108
        %v2111 = vld [vmem:[%s2078] sm:$0xff]
        %v2112 = vld [vmem:[%s2078 + $0x8] sm:$0xff]
        %v2113 = vsub.f32 %v2111, %v2085
        %v2114 = vsub.f32 %v2112, %v2085
        %v2115 = vmul.f32 %v2113, %v2104
        %v2116 = vmul.f32 %v2114, %v2104
        %v2117 = vmax.f32 %v2115, 0.0
        %v2118 = vmax.f32 %v2116, 0.0
        %2119 = vst [vmem:[%s2078] sm:$0xff] %v2117
        %2120 = vst [vmem:[%s2078 + $0x8] sm:$0xff] %v2118
      $region32: #{basic_layer_forward.1} parent=27 // pred_fallthru
        _
      // Predicated region
      $region33: #{basic_layer_forward.1} parent=27 // pred_check
        %p2121 = pneg %p73
      $region34: #{basic_layer_forward.1} parent=27 // pred_check_branch
        %2123 = sbr.rel (%p2121) target = $region36
      $region35: #{basic_layer_forward.1} parent=27 // pred_region
        _
      $region36: #{basic_layer_forward.1} parent=27 // pred_fallthru
        _
      // Predicated region
      $region37: #{basic_layer_forward.1} parent=27 // pred_check
        %p2124 = pneg %p73
      $region38: #{basic_layer_forward.1} parent=27 // pred_check_branch
        %2126 = sbr.rel (%p2124) target = $region40
      $region39: #{basic_layer_forward.1} parent=27 // pred_region
        _
      $region40: #{basic_layer_forward.1} parent=27 // pred_fallthru
        _
    $region28: #{basic_layer_forward.1} parent=5 // pred_fallthru
      _
    %p2127 = scmp.le.s32.totalorder 2, %s8
    // Predicated region
    $region41: #{basic_layer_forward.1} parent=5 // pred_check
      %p2128 = pneg %p2127
    $region42: #{basic_layer_forward.1} parent=5 // pred_check_branch
      %2130 = sbr.rel (%p2128) target = $region44
    $region43: #{basic_layer_forward.1} parent=5 // pred_region
      %s2131 = ssub.s32 %s8, 2
    $region44: #{basic_layer_forward.1} parent=5 // pred_fallthru
      _
  $region6: #{basic_layer_forward.1} parent=0 // loop_footer
    %s12 = sadd.s32 1, %s8
  $region7: #{basic_layer_forward.1} parent=0 // loop_footer_branch
    %7 = sbr.rel target = $region3
  $region8: #{basic_layer_forward.1} parent=0 // loop_exit
    _

</llo_original>
